<compile_context>
chip_gen: v7x
topology: tpu7x:2x2x1
jax: 0.10.0
libtpu: 0.0.40
codegen_flags: <defaults>
</compile_context>

<pallas_src>
import jax
import jax.numpy as jnp
from jax import lax
from jax.experimental import pallas as pl
from jax.experimental.pallas import tpu as pltpu


def bottleneck_kernel(x_ref, w1_ref, s1_ref, b1_ref,
                      w2_ref, s2_ref, b2_ref,
                      w3_ref, s3_ref, b3_ref,
                      out_ref, pad_ref):
    H, W, Cp = x_ref.shape          # one image per grid step (batch dim squeezed)
    Pp = w1_ref.shape[1]            # padded "planes"
    HW = H * W

    # ---- conv1 (1x1) + bn1 + relu : bf16 MXU matmul, f32 accumulate ----------
    xm = x_ref[...].reshape(HW, Cp).astype(jnp.bfloat16)
    y1 = jnp.dot(xm, w1_ref[...], preferred_element_type=jnp.float32)
    y1 = jnp.maximum(y1 * s1_ref[...] + b1_ref[...], 0.0)

    # ---- conv2 (3x3, stride=1, pad=1) via single big-K im2col matmul ---------
    # Zero only the 1-pixel halo (re-done every step: scratch is per-core and the
    # grid may be split across TensorCores), then store the tile interior once.
    pad_ref[0:1, :, :] = jnp.zeros((1, W + 2, Pp), jnp.bfloat16)
    pad_ref[H + 1:H + 2, :, :] = jnp.zeros((1, W + 2, Pp), jnp.bfloat16)
    pad_ref[:, 0:1, :] = jnp.zeros((H + 2, 1, Pp), jnp.bfloat16)
    pad_ref[:, W + 1:W + 2, :] = jnp.zeros((H + 2, 1, Pp), jnp.bfloat16)
    pad_ref[1:H + 1, 1:W + 1, :] = y1.astype(jnp.bfloat16).reshape(H, W, Pp)

    im2col = jnp.concatenate(
        [pad_ref[ky:ky + H, kx:kx + W, :].reshape(HW, Pp)
         for ky in range(3) for kx in range(3)],
        axis=-1)                                            # (HW, 9*Pp) bf16
    y2 = jnp.dot(im2col, w2_ref[...], preferred_element_type=jnp.float32)
    y2 = jnp.maximum(y2 * s2_ref[...] + b2_ref[...], 0.0)

    # ---- conv3 (1x1) + bn3 ----------------------------------------------------
    y3 = jnp.dot(y2.astype(jnp.bfloat16), w3_ref[...],
                 preferred_element_type=jnp.float32)
    y3 = y3 * s3_ref[...] + b3_ref[...]

    # ---- residual add (downsample=None -> residual = x) + relu, in f32 -------
    res = x_ref[...].reshape(HW, Cp)        # re-load tile (already in VMEM)
    out = jnp.maximum(y3 + res, 0.0)
    out_ref[...] = out.reshape(H, W, Cp).astype(out_ref.dtype)


def fold_bn(gamma, beta, mean, var, eps=1e-5):
    scale = gamma / jnp.sqrt(var + eps)
    bias = beta - mean * scale
    return scale.reshape(1, -1), bias.reshape(1, -1)


def _round_up(v, m):
    return (v + m - 1) // m * m


def bottleneck_forward(x_nchw, params):
    """x_nchw: (N, Cin, H, W) float32. Returns (N, Cin, H, W) float32."""
    (w1, bn1), (w2, bn2), (w3, bn3) = params     # w1:(Cin,P)  w2:(3,3,P,P) HWIO  w3:(P,Cout)
    N, Cin, H, W = x_nchw.shape
    P = w1.shape[1]
    Cout = w3.shape[1]
    assert Cout == Cin, "downsample=None requires inplanes == planes * 4"

    LANE = 128
    Cp = _round_up(Cin, LANE)       # lane-dense input/output channels
    Pp = _round_up(P, LANE)         # lane-dense bottleneck channels

    # TODO(synk): keep the surrounding model in NHWC so these transposes fold away.
    x = jnp.transpose(x_nchw, (0, 2, 3, 1)).astype(jnp.float32)        # -> NHWC
    x = jnp.pad(x, ((0, 0), (0, 0), (0, 0), (0, Cp - Cin)))

    s1, b1 = fold_bn(*bn1)
    s2, b2 = fold_bn(*bn2)
    s3, b3 = fold_bn(*bn3)

    def pad2d(a, rows, cols):
        return jnp.pad(a, ((0, rows - a.shape[0]), (0, cols - a.shape[1])))

    # Padded (lane-dense) weights in bf16; padded BN scale/bias are zero so padded
    # channels stay exactly zero through the whole block.
    w1p = pad2d(w1, Cp, Pp).astype(jnp.bfloat16)                        # (Cp, Pp)
    w2p = jnp.pad(w2, ((0, 0), (0, 0), (0, Pp - P), (0, Pp - P)))
    w2p = w2p.reshape(9 * Pp, Pp).astype(jnp.bfloat16)                  # (9*Pp, Pp)
    w3p = pad2d(w3, Pp, Cp).astype(jnp.bfloat16)                        # (Pp, Cp)
    s1p, b1p = pad2d(s1, 1, Pp), pad2d(b1, 1, Pp)
    s2p, b2p = pad2d(s2, 1, Pp), pad2d(b2, 1, Pp)
    s3p, b3p = pad2d(s3, 1, Cp), pad2d(b3, 1, Cp)

    def resident(shape):
        return pl.BlockSpec(shape, lambda n: (0,) * len(shape))

    img_spec = pl.BlockSpec((pl.Squeezed(), H, W, Cp), lambda n: (n, 0, 0, 0))

    grid_spec = pltpu.PrefetchScalarGridSpec(
        num_scalar_prefetch=0,
        grid=(N,),
        in_specs=[
            img_spec,                                   # x
            resident((Cp, Pp)), resident((1, Pp)), resident((1, Pp)),      # conv1/bn1
            resident((9 * Pp, Pp)), resident((1, Pp)), resident((1, Pp)),  # conv2/bn2
            resident((Pp, Cp)), resident((1, Cp)), resident((1, Cp)),      # conv3/bn3
        ],
        out_specs=img_spec,
        scratch_shapes=[pltpu.VMEM((H + 2, W + 2, Pp), jnp.bfloat16)],
    )

    flops = 2 * N * H * W * (Cp * Pp + 9 * Pp * Pp + Pp * Cp)
    bytes_accessed = (2 * N * H * W * Cp * 4                     # x in + out (f32)
                      + (w1p.size + w2p.size + w3p.size) * 2      # bf16 weights
                      + 6 * Pp * 4 + 6 * Cp * 4)                  # scales/biases
    cost = pl.CostEstimate(flops=int(flops), transcendentals=0,
                           bytes_accessed=int(bytes_accessed))

    out = pl.pallas_call(
        bottleneck_kernel,
        out_shape=jax.ShapeDtypeStruct((N, H, W, Cp), jnp.float32),
        grid_spec=grid_spec,
        compiler_params=pltpu.CompilerParams(
            dimension_semantics=("parallel",),
            vmem_limit_bytes=64 * 1024 * 1024),
        cost_estimate=cost,
    )(x, w1p, s1p, b1p, w2p, s2p, b2p, w3p, s3p, b3p)

    out = out[..., :Cin]                                  # drop padded channels
    return jnp.transpose(out, (0, 3, 1, 2))               # back to NCHW


def bottleneck_reference(x_nchw, params_oihw):
    """Pure-JAX NCHW reference (matches PyTorch eval-mode forward)."""
    (w1, bn1), (w2, bn2), (w3, bn3) = params_oihw

    def bn(y, g, b, m, v, eps=1e-5):
        g, b, m, v = (t.reshape(1, -1, 1, 1) for t in (g, b, m, v))
        return (y - m) / jnp.sqrt(v + eps) * g + b

    def conv(y, w, pad):
        return lax.conv_general_dilated(
            y, w, window_strides=(1, 1), padding=[(pad, pad), (pad, pad)],
            dimension_numbers=("NCHW", "OIHW", "NCHW"),
            precision=lax.Precision.HIGHEST)

    out = jax.nn.relu(bn(conv(x_nchw, w1, 0), *bn1))
    out = jax.nn.relu(bn(conv(out, w2, 1), *bn2))
    out = bn(conv(out, w3, 0), *bn3)
    return jax.nn.relu(out + x_nchw)


def make_params(key, inplanes, planes):
    ks = jax.random.split(key, 15)
    exp = 4

    def bn_params(kg, kb, km, kv, C):
        gamma = 1.0 + 0.1 * jax.random.normal(kg, (C,), jnp.float32)
        beta = 0.1 * jax.random.normal(kb, (C,), jnp.float32)
        mean = 0.1 * jax.random.normal(km, (C,), jnp.float32)
        var = jnp.abs(jax.random.normal(kv, (C,), jnp.float32)) + 0.5
        return gamma, beta, mean, var

    # OIHW weights (PyTorch convention)
    w1_oihw = jax.random.normal(ks[0], (planes, inplanes, 1, 1), jnp.float32) / jnp.sqrt(inplanes)
    w2_oihw = jax.random.normal(ks[1], (planes, planes, 3, 3), jnp.float32) / jnp.sqrt(9 * planes)
    w3_oihw = jax.random.normal(ks[2], (planes * exp, planes, 1, 1), jnp.float32) / jnp.sqrt(planes)
    bn1 = bn_params(ks[3], ks[4], ks[5], ks[6], planes)
    bn2 = bn_params(ks[7], ks[8], ks[9], ks[10], planes)
    bn3 = bn_params(ks[11], ks[12], ks[13], ks[14], planes * exp)

    params_oihw = ((w1_oihw, bn1), (w2_oihw, bn2), (w3_oihw, bn3))
    # Kernel-friendly formats: 1x1 -> (Cin, Cout); 3x3 -> HWIO (3, 3, Cin, Cout)
    w1_k = jnp.transpose(w1_oihw[:, :, 0, 0], (1, 0))
    w2_k = jnp.transpose(w2_oihw, (2, 3, 1, 0))
    w3_k = jnp.transpose(w3_oihw[:, :, 0, 0], (1, 0))
    params_kernel = ((w1_k, bn1), (w2_k, bn2), (w3_k, bn3))
    return params_kernel, params_oihw


if __name__ == "__main__":
    # Small shapes consistent with the module: inplanes = planes * expansion (downsample=None)
    N, planes, H, W = 2, 8, 8, 8
    inplanes = planes * 4  # 32

    key = jax.random.PRNGKey(0)
    kx, kp = jax.random.split(key)
    x = jax.random.normal(kx, (N, inplanes, H, W), jnp.float32)
    params_kernel, params_oihw = make_params(kp, inplanes, planes)

    out = bottleneck_forward(x, params_kernel)
    out = jax.block_until_ready(out)

    ref = bottleneck_reference(x, params_oihw)
    assert out.shape == ref.shape == (N, inplanes, H, W)
    # bf16 matmuls vs f32 HIGHEST reference -> loosened tolerance
    assert jnp.allclose(out, ref, atol=5e-2, rtol=5e-2), float(jnp.max(jnp.abs(out - ref)))

    print("KERNEL_OK")
</pallas_src>

<mosaic_0001>
module attributes {stable_mosaic.version = 11 : i64} {
  func.func @bottleneck_kernel(%arg0: i32, %arg1: memref<1x8x8x128xf32, #tpu.memory_space<vmem>>, %arg2: memref<128x128xbf16, #tpu.memory_space<vmem>>, %arg3: memref<1x128xf32, #tpu.memory_space<vmem>>, %arg4: memref<1x128xf32, #tpu.memory_space<vmem>>, %arg5: memref<1152x128xbf16, #tpu.memory_space<vmem>>, %arg6: memref<1x128xf32, #tpu.memory_space<vmem>>, %arg7: memref<1x128xf32, #tpu.memory_space<vmem>>, %arg8: memref<128x128xbf16, #tpu.memory_space<vmem>>, %arg9: memref<1x128xf32, #tpu.memory_space<vmem>>, %arg10: memref<1x128xf32, #tpu.memory_space<vmem>>, %arg11: memref<1x8x8x128xf32, #tpu.memory_space<vmem>>, %arg12: memref<10x10x128xbf16, #tpu.memory_space<vmem>>) attributes {dimension_semantics = [#tpu.dimension_semantics<parallel>], iteration_bounds = array<i64: 2>, scalar_prefetch = 0 : i64, scratch_operands = 1 : i64, tpu.core_type = #tpu.core_type<tc>, window_params = [{transform_indices = @transform_0, window_bounds = array<i64: 1, 8, 8, 128>}, {pipeline_mode = #tpu.pipeline_mode<synchronous>, transform_indices = @transform_1, window_bounds = array<i64: 128, 128>}, {pipeline_mode = #tpu.pipeline_mode<synchronous>, transform_indices = @transform_2, window_bounds = array<i64: 1, 128>}, {pipeline_mode = #tpu.pipeline_mode<synchronous>, transform_indices = @transform_3, window_bounds = array<i64: 1, 128>}, {pipeline_mode = #tpu.pipeline_mode<synchronous>, transform_indices = @transform_4, window_bounds = array<i64: 1152, 128>}, {pipeline_mode = #tpu.pipeline_mode<synchronous>, transform_indices = @transform_5, window_bounds = array<i64: 1, 128>}, {pipeline_mode = #tpu.pipeline_mode<synchronous>, transform_indices = @transform_6, window_bounds = array<i64: 1, 128>}, {pipeline_mode = #tpu.pipeline_mode<synchronous>, transform_indices = @transform_7, window_bounds = array<i64: 128, 128>}, {pipeline_mode = #tpu.pipeline_mode<synchronous>, transform_indices = @transform_8, window_bounds = array<i64: 1, 128>}, {pipeline_mode = #tpu.pipeline_mode<synchronous>, transform_indices = @transform_9, window_bounds = array<i64: 1, 128>}, {transform_indices = @transform_10, window_bounds = array<i64: 1, 8, 8, 128>}]} {
    %c0 = arith.constant 0 : index
    %c0_0 = arith.constant 0 : index
    %c0_1 = arith.constant 0 : index
    %c0_2 = arith.constant 0 : index
    %0 = vector.load %arg1[%c0, %c0_0, %c0_1, %c0_2] : memref<1x8x8x128xf32, #tpu.memory_space<vmem>>, vector<1x8x8x128xf32>
    %1 = vector.shape_cast %0 : vector<1x8x8x128xf32> to vector<8x8x128xf32>
    %2 = vector.shape_cast %1 : vector<8x8x128xf32> to vector<64x128xf32>
    %3 = arith.truncf %2 : vector<64x128xf32> to vector<64x128xbf16>
    %c0_3 = arith.constant 0 : index
    %c0_4 = arith.constant 0 : index
    %4 = vector.load %arg2[%c0_3, %c0_4] : memref<128x128xbf16, #tpu.memory_space<vmem>>, vector<128x128xbf16>
    %cst = arith.constant dense<0.000000e+00> : vector<64x128xf32>
    %5 = tpu.matmul %3, %4, %cst {dimension_numbers = #tpu.dot_dimension_numbers<[1], [0], [0], [1], [0, 0, 1, 1], [], []>} : vector<64x128xbf16>, vector<128x128xbf16>, vector<64x128xf32> -> vector<64x128xf32>
    %c0_5 = arith.constant 0 : index
    %c0_6 = arith.constant 0 : index
    %6 = vector.load %arg3[%c0_5, %c0_6] : memref<1x128xf32, #tpu.memory_space<vmem>>, vector<1x128xf32>
    %7 = vector.broadcast %6 : vector<1x128xf32> to vector<64x128xf32>
    %8 = arith.mulf %5, %7 : vector<64x128xf32>
    %c0_7 = arith.constant 0 : index
    %c0_8 = arith.constant 0 : index
    %9 = vector.load %arg4[%c0_7, %c0_8] : memref<1x128xf32, #tpu.memory_space<vmem>>, vector<1x128xf32>
    %10 = vector.broadcast %9 : vector<1x128xf32> to vector<64x128xf32>
    %11 = arith.addf %8, %10 : vector<64x128xf32>
    %cst_9 = arith.constant 0.000000e+00 : f32
    %12 = vector.broadcast %cst_9 : f32 to vector<64x128xf32>
    %13 = arith.maximumf %11, %12 : vector<64x128xf32>
    %cst_10 = arith.constant 0.000000e+00 : bf16
    %14 = vector.broadcast %cst_10 : bf16 to vector<1x10x128xbf16>
    %c0_11 = arith.constant 0 : index
    %c0_12 = arith.constant 0 : index
    %c0_13 = arith.constant 0 : index
    %15 = vector.load %arg12[%c0_11, %c0_12, %c0_13] : memref<10x10x128xbf16, #tpu.memory_space<vmem>>, vector<1x10x128xbf16>
    tpu.vector_store %arg12[%c0_11, %c0_12, %c0_13], %14 {strides = array<i32>} : memref<10x10x128xbf16, #tpu.memory_space<vmem>>, vector<1x10x128xbf16>,
    %cst_14 = arith.constant 0.000000e+00 : bf16
    %16 = vector.broadcast %cst_14 : bf16 to vector<1x10x128xbf16>
    %c9 = arith.constant 9 : index
    %c0_15 = arith.constant 0 : index
    %c0_16 = arith.constant 0 : index
    %17 = vector.load %arg12[%c9, %c0_15, %c0_16] : memref<10x10x128xbf16, #tpu.memory_space<vmem>>, vector<1x10x128xbf16>
    tpu.vector_store %arg12[%c9, %c0_15, %c0_16], %16 {strides = array<i32>} : memref<10x10x128xbf16, #tpu.memory_space<vmem>>, vector<1x10x128xbf16>,
    %cst_17 = arith.constant 0.000000e+00 : bf16
    %18 = vector.broadcast %cst_17 : bf16 to vector<10x1x128xbf16>
    %c0_18 = arith.constant 0 : index
    %c0_19 = arith.constant 0 : index
    %c0_20 = arith.constant 0 : index
    %19 = vector.load %arg12[%c0_18, %c0_19, %c0_20] : memref<10x10x128xbf16, #tpu.memory_space<vmem>>, vector<10x1x128xbf16>
    tpu.vector_store %arg12[%c0_18, %c0_19, %c0_20], %18 {strides = array<i32>} : memref<10x10x128xbf16, #tpu.memory_space<vmem>>, vector<10x1x128xbf16>,
    %cst_21 = arith.constant 0.000000e+00 : bf16
    %20 = vector.broadcast %cst_21 : bf16 to vector<10x1x128xbf16>
    %c0_22 = arith.constant 0 : index
    %c9_23 = arith.constant 9 : index
    %c0_24 = arith.constant 0 : index
    %21 = vector.load %arg12[%c0_22, %c9_23, %c0_24] : memref<10x10x128xbf16, #tpu.memory_space<vmem>>, vector<10x1x128xbf16>
    tpu.vector_store %arg12[%c0_22, %c9_23, %c0_24], %20 {strides = array<i32>} : memref<10x10x128xbf16, #tpu.memory_space<vmem>>, vector<10x1x128xbf16>,
    %22 = arith.truncf %13 : vector<64x128xf32> to vector<64x128xbf16>
    %23 = vector.shape_cast %22 : vector<64x128xbf16> to vector<8x8x128xbf16>
    %c1 = arith.constant 1 : index
    %c1_25 = arith.constant 1 : index
    %c0_26 = arith.constant 0 : index
    %24 = vector.load %arg12[%c1, %c1_25, %c0_26] : memref<10x10x128xbf16, #tpu.memory_space<vmem>>, vector<8x8x128xbf16>
    tpu.vector_store %arg12[%c1, %c1_25, %c0_26], %23 {strides = array<i32>} : memref<10x10x128xbf16, #tpu.memory_space<vmem>>, vector<8x8x128xbf16>,
    %c0_27 = arith.constant 0 : index
    %c0_28 = arith.constant 0 : index
    %c0_29 = arith.constant 0 : index
    %25 = vector.load %arg12[%c0_27, %c0_28, %c0_29] : memref<10x10x128xbf16, #tpu.memory_space<vmem>>, vector<8x8x128xbf16>
    %26 = vector.shape_cast %25 : vector<8x8x128xbf16> to vector<64x128xbf16>
    %c0_30 = arith.constant 0 : index
    %c1_31 = arith.constant 1 : index
    %c0_32 = arith.constant 0 : index
    %27 = vector.load %arg12[%c0_30, %c1_31, %c0_32] : memref<10x10x128xbf16, #tpu.memory_space<vmem>>, vector<8x8x128xbf16>
    %28 = vector.shape_cast %27 : vector<8x8x128xbf16> to vector<64x128xbf16>
    %c0_33 = arith.constant 0 : index
    %c2 = arith.constant 2 : index
    %c0_34 = arith.constant 0 : index
    %29 = vector.load %arg12[%c0_33, %c2, %c0_34] : memref<10x10x128xbf16, #tpu.memory_space<vmem>>, vector<8x8x128xbf16>
    %30 = vector.shape_cast %29 : vector<8x8x128xbf16> to vector<64x128xbf16>
    %c1_35 = arith.constant 1 : index
    %c0_36 = arith.constant 0 : index
    %c0_37 = arith.constant 0 : index
    %31 = vector.load %arg12[%c1_35, %c0_36, %c0_37] : memref<10x10x128xbf16, #tpu.memory_space<vmem>>, vector<8x8x128xbf16>
    %32 = vector.shape_cast %31 : vector<8x8x128xbf16> to vector<64x128xbf16>
    %c1_38 = arith.constant 1 : index
    %c1_39 = arith.constant 1 : index
    %c0_40 = arith.constant 0 : index
    %33 = vector.load %arg12[%c1_38, %c1_39, %c0_40] : memref<10x10x128xbf16, #tpu.memory_space<vmem>>, vector<8x8x128xbf16>
    %34 = vector.shape_cast %33 : vector<8x8x128xbf16> to vector<64x128xbf16>
    %c1_41 = arith.constant 1 : index
    %c2_42 = arith.constant 2 : index
    %c0_43 = arith.constant 0 : index
    %35 = vector.load %arg12[%c1_41, %c2_42, %c0_43] : memref<10x10x128xbf16, #tpu.memory_space<vmem>>, vector<8x8x128xbf16>
    %36 = vector.shape_cast %35 : vector<8x8x128xbf16> to vector<64x128xbf16>
    %c2_44 = arith.constant 2 : index
    %c0_45 = arith.constant 0 : index
    %c0_46 = arith.constant 0 : index
    %37 = vector.load %arg12[%c2_44, %c0_45, %c0_46] : memref<10x10x128xbf16, #tpu.memory_space<vmem>>, vector<8x8x128xbf16>
    %38 = vector.shape_cast %37 : vector<8x8x128xbf16> to vector<64x128xbf16>
    %c2_47 = arith.constant 2 : index
    %c1_48 = arith.constant 1 : index
    %c0_49 = arith.constant 0 : index
    %39 = vector.load %arg12[%c2_47, %c1_48, %c0_49] : memref<10x10x128xbf16, #tpu.memory_space<vmem>>, vector<8x8x128xbf16>
    %40 = vector.shape_cast %39 : vector<8x8x128xbf16> to vector<64x128xbf16>
    %c2_50 = arith.constant 2 : index
    %c2_51 = arith.constant 2 : index
    %c0_52 = arith.constant 0 : index
    %41 = vector.load %arg12[%c2_50, %c2_51, %c0_52] : memref<10x10x128xbf16, #tpu.memory_space<vmem>>, vector<8x8x128xbf16>
    %42 = vector.shape_cast %41 : vector<8x8x128xbf16> to vector<64x128xbf16>
    %43 = tpu.concatenate %26, %28, %30, %32, %34, %36, %38, %40, %42 in 1 : vector<64x128xbf16>, vector<64x128xbf16>, vector<64x128xbf16>, vector<64x128xbf16>, vector<64x128xbf16>, vector<64x128xbf16>, vector<64x128xbf16>, vector<64x128xbf16>, vector<64x128xbf16> -> vector<64x1152xbf16>
    %c0_53 = arith.constant 0 : index
    %c0_54 = arith.constant 0 : index
    %44 = vector.load %arg5[%c0_53, %c0_54] : memref<1152x128xbf16, #tpu.memory_space<vmem>>, vector<1152x128xbf16>
    %cst_55 = arith.constant dense<0.000000e+00> : vector<64x128xf32>
    %45 = tpu.matmul %43, %44, %cst_55 {dimension_numbers = #tpu.dot_dimension_numbers<[1], [0], [0], [1], [0, 0, 1, 1], [], []>} : vector<64x1152xbf16>, vector<1152x128xbf16>, vector<64x128xf32> -> vector<64x128xf32>
    %c0_56 = arith.constant 0 : index
    %c0_57 = arith.constant 0 : index
    %46 = vector.load %arg6[%c0_56, %c0_57] : memref<1x128xf32, #tpu.memory_space<vmem>>, vector<1x128xf32>
    %47 = vector.broadcast %46 : vector<1x128xf32> to vector<64x128xf32>
    %48 = arith.mulf %45, %47 : vector<64x128xf32>
    %c0_58 = arith.constant 0 : index
    %c0_59 = arith.constant 0 : index
    %49 = vector.load %arg7[%c0_58, %c0_59] : memref<1x128xf32, #tpu.memory_space<vmem>>, vector<1x128xf32>
    %50 = vector.broadcast %49 : vector<1x128xf32> to vector<64x128xf32>
    %51 = arith.addf %48, %50 : vector<64x128xf32>
    %cst_60 = arith.constant 0.000000e+00 : f32
    %52 = vector.broadcast %cst_60 : f32 to vector<64x128xf32>
    %53 = arith.maximumf %51, %52 : vector<64x128xf32>
    %54 = arith.truncf %53 : vector<64x128xf32> to vector<64x128xbf16>
    %c0_61 = arith.constant 0 : index
    %c0_62 = arith.constant 0 : index
    %55 = vector.load %arg8[%c0_61, %c0_62] : memref<128x128xbf16, #tpu.memory_space<vmem>>, vector<128x128xbf16>
    %cst_63 = arith.constant dense<0.000000e+00> : vector<64x128xf32>
    %56 = tpu.matmul %54, %55, %cst_63 {dimension_numbers = #tpu.dot_dimension_numbers<[1], [0], [0], [1], [0, 0, 1, 1], [], []>} : vector<64x128xbf16>, vector<128x128xbf16>, vector<64x128xf32> -> vector<64x128xf32>
    %c0_64 = arith.constant 0 : index
    %c0_65 = arith.constant 0 : index
    %57 = vector.load %arg9[%c0_64, %c0_65] : memref<1x128xf32, #tpu.memory_space<vmem>>, vector<1x128xf32>
    %58 = vector.broadcast %57 : vector<1x128xf32> to vector<64x128xf32>
    %59 = arith.mulf %56, %58 : vector<64x128xf32>
    %c0_66 = arith.constant 0 : index
    %c0_67 = arith.constant 0 : index
    %60 = vector.load %arg10[%c0_66, %c0_67] : memref<1x128xf32, #tpu.memory_space<vmem>>, vector<1x128xf32>
    %61 = vector.broadcast %60 : vector<1x128xf32> to vector<64x128xf32>
    %62 = arith.addf %59, %61 : vector<64x128xf32>
    %c0_68 = arith.constant 0 : index
    %c0_69 = arith.constant 0 : index
    %c0_70 = arith.constant 0 : index
    %c0_71 = arith.constant 0 : index
    %63 = vector.load %arg1[%c0_68, %c0_69, %c0_70, %c0_71] : memref<1x8x8x128xf32, #tpu.memory_space<vmem>>, vector<1x8x8x128xf32>
    %64 = vector.shape_cast %63 : vector<1x8x8x128xf32> to vector<8x8x128xf32>
    %65 = vector.shape_cast %64 : vector<8x8x128xf32> to vector<64x128xf32>
    %66 = arith.addf %62, %65 : vector<64x128xf32>
    %cst_72 = arith.constant 0.000000e+00 : f32
    %67 = vector.broadcast %cst_72 : f32 to vector<64x128xf32>
    %68 = arith.maximumf %66, %67 : vector<64x128xf32>
    %69 = vector.shape_cast %68 : vector<64x128xf32> to vector<8x8x128xf32>
    %c0_73 = arith.constant 0 : index
    %c0_74 = arith.constant 0 : index
    %c0_75 = arith.constant 0 : index
    %c0_76 = arith.constant 0 : index
    %70 = vector.load %arg11[%c0_73, %c0_74, %c0_75, %c0_76] : memref<1x8x8x128xf32, #tpu.memory_space<vmem>>, vector<1x8x8x128xf32>
    %71 = vector.shape_cast %70 : vector<1x8x8x128xf32> to vector<8x8x128xf32>
    %72 = vector.shape_cast %69 : vector<8x8x128xf32> to vector<1x8x8x128xf32>
    tpu.vector_store %arg11[%c0_73, %c0_74, %c0_75, %c0_76], %72 {strides = array<i32>} : memref<1x8x8x128xf32, #tpu.memory_space<vmem>>, vector<1x8x8x128xf32>,
    return
  }
  func.func @transform_0(%arg0: i32) -> (i32, i32, i32, i32) {
    %c0_i32 = arith.constant 0 : i32
    %c0_i32_0 = arith.constant 0 : i32
    %c0_i32_1 = arith.constant 0 : i32
    %c0_i32_2 = arith.constant 0 : i32
    return %arg0, %c0_i32, %c0_i32_0, %c0_i32_1 : i32, i32, i32, i32
  }
  func.func @transform_1(%arg0: i32) -> (i32, i32) {
    %c0_i32 = arith.constant 0 : i32
    %c0_i32_0 = arith.constant 0 : i32
    %c0_i32_1 = arith.constant 0 : i32
    return %c0_i32, %c0_i32_0 : i32, i32
  }
  func.func @transform_2(%arg0: i32) -> (i32, i32) {
    %c0_i32 = arith.constant 0 : i32
    %c0_i32_0 = arith.constant 0 : i32
    %c0_i32_1 = arith.constant 0 : i32
    return %c0_i32, %c0_i32_0 : i32, i32
  }
  func.func @transform_3(%arg0: i32) -> (i32, i32) {
    %c0_i32 = arith.constant 0 : i32
    %c0_i32_0 = arith.constant 0 : i32
    %c0_i32_1 = arith.constant 0 : i32
    return %c0_i32, %c0_i32_0 : i32, i32
  }
  func.func @transform_4(%arg0: i32) -> (i32, i32) {
    %c0_i32 = arith.constant 0 : i32
    %c0_i32_0 = arith.constant 0 : i32
    %c0_i32_1 = arith.constant 0 : i32
    return %c0_i32, %c0_i32_0 : i32, i32
  }
  func.func @transform_5(%arg0: i32) -> (i32, i32) {
    %c0_i32 = arith.constant 0 : i32
    %c0_i32_0 = arith.constant 0 : i32
    %c0_i32_1 = arith.constant 0 : i32
    return %c0_i32, %c0_i32_0 : i32, i32
  }
  func.func @transform_6(%arg0: i32) -> (i32, i32) {
    %c0_i32 = arith.constant 0 : i32
    %c0_i32_0 = arith.constant 0 : i32
    %c0_i32_1 = arith.constant 0 : i32
    return %c0_i32, %c0_i32_0 : i32, i32
  }
  func.func @transform_7(%arg0: i32) -> (i32, i32) {
    %c0_i32 = arith.constant 0 : i32
    %c0_i32_0 = arith.constant 0 : i32
    %c0_i32_1 = arith.constant 0 : i32
    return %c0_i32, %c0_i32_0 : i32, i32
  }
  func.func @transform_8(%arg0: i32) -> (i32, i32) {
    %c0_i32 = arith.constant 0 : i32
    %c0_i32_0 = arith.constant 0 : i32
    %c0_i32_1 = arith.constant 0 : i32
    return %c0_i32, %c0_i32_0 : i32, i32
  }
  func.func @transform_9(%arg0: i32) -> (i32, i32) {
    %c0_i32 = arith.constant 0 : i32
    %c0_i32_0 = arith.constant 0 : i32
    %c0_i32_1 = arith.constant 0 : i32
    return %c0_i32, %c0_i32_0 : i32, i32
  }
  func.func @transform_10(%arg0: i32) -> (i32, i32, i32, i32) {
    %c0_i32 = arith.constant 0 : i32
    %c0_i32_0 = arith.constant 0 : i32
    %c0_i32_1 = arith.constant 0 : i32
    %c0_i32_2 = arith.constant 0 : i32
    return %arg0, %c0_i32, %c0_i32_0, %c0_i32_1 : i32, i32, i32, i32
  }
}

</mosaic_0001>

<llo_original>
// kernel: tpu_custom_call.1
$region0: #{tpu_custom_call.1}
  #allocation0 [shape = 'u32[]', space=smem, size = 0x4, offset = 0x4, fixed_abs, tag = 'smem constant byte address 0x4 - core index']
  #allocation1 [shape = 'u32[144,128]{1,0:T(1,128)}', space=vmem, size = 0x12000, scoped, tag = 'internal scratch']
  #allocation2 [shape = 'bf16[10,10,128]{2,1,0:T(8,128)(2,1)}', space=vmem, size = 0xa000, scoped, tag = 'scratch operand']
  %s0 = inlined_call_operand.hbm [shape: f32[2,8,8,128], index: 0, kind: input, shape index: {}]
  %s1 = inlined_call_operand.hbm [shape: bf16[128,128], index: 1, kind: input, shape index: {}]
  %s2 = inlined_call_operand.hbm [shape: f32[1,128], index: 2, kind: input, shape index: {}]
  %s3 = inlined_call_operand.hbm [shape: f32[1,128], index: 3, kind: input, shape index: {}]
  %s4 = inlined_call_operand.hbm [shape: bf16[1152,128], index: 4, kind: input, shape index: {}]
  %s5 = inlined_call_operand.hbm [shape: f32[1,128], index: 5, kind: input, shape index: {}]
  %s6 = inlined_call_operand.hbm [shape: f32[1,128], index: 6, kind: input, shape index: {}]
  %s7 = inlined_call_operand.hbm [shape: bf16[128,128], index: 7, kind: input, shape index: {}]
  %s8 = inlined_call_operand.hbm [shape: f32[1,128], index: 8, kind: input, shape index: {}]
  %s9 = inlined_call_operand.hbm [shape: f32[1,128], index: 9, kind: input, shape index: {}]
  %s10 = inlined_call_operand.hbm [shape: f32[2,8,8,128], index: 10, kind: output, shape index: {}]
  %s11 = sld [smem:[#allocation0]]
  $region113: #{tpu_custom_call.1} parent=0
    _
  %s13 = ssub.s32 1, %s11
  %s14 = scalar_select 0, %s13, %s11
  $region1: #{tpu_custom_call.1} parent=0
    #allocation3 [shape = 'u8[65536]{0}', space=vmem, size = 0x10000, scoped, tag = 'input window, operand 0']
    #allocation4 [shape = 's32[2]{0}', space=sflag, size = 0x8, scoped, tag = 'scoped memory for tpu_custom_call.1']
    #allocation5 [shape = 's32[2]{0}', space=sflag, size = 0x8, scoped, tag = 'scoped memory for tpu_custom_call.1']
    #allocation6 [shape = 'u8[32768]{0}', space=vmem, size = 0x8000, scoped, tag = 'input window, operand 1, single buffered']
    #allocation7 [shape = 's32[1]{0}', space=sflag, size = 0x4, scoped, tag = 'scoped memory for tpu_custom_call.1']
    #allocation8 [shape = 'u8[512]{0}', space=vmem, size = 0x400, scoped, tag = 'input window, operand 2, single buffered']
    #allocation9 [shape = 'u8[512]{0}', space=vmem, size = 0x400, scoped, tag = 'input window, operand 3, single buffered']
    #allocation10 [shape = 's32[1]{0}', space=sflag, size = 0x4, scoped, tag = 'scoped memory for tpu_custom_call.1']
    #allocation11 [shape = 'u8[294912]{0}', space=vmem, size = 0x48000, scoped, tag = 'input window, operand 4, single buffered']
    #allocation12 [shape = 'u8[512]{0}', space=vmem, size = 0x400, scoped, tag = 'input window, operand 5, single buffered']
    #allocation13 [shape = 's32[1]{0}', space=sflag, size = 0x4, scoped, tag = 'scoped memory for tpu_custom_call.1']
    #allocation14 [shape = 'u8[512]{0}', space=vmem, size = 0x400, scoped, tag = 'input window, operand 6, single buffered']
    #allocation15 [shape = 'u8[32768]{0}', space=vmem, size = 0x8000, scoped, tag = 'input window, operand 7, single buffered']
    #allocation16 [shape = 's32[1]{0}', space=sflag, size = 0x4, scoped, tag = 'scoped memory for tpu_custom_call.1']
    #allocation17 [shape = 'u8[512]{0}', space=vmem, size = 0x400, scoped, tag = 'input window, operand 8, single buffered']
    #allocation18 [shape = 'u8[512]{0}', space=vmem, size = 0x400, scoped, tag = 'input window, operand 9, single buffered']
    #allocation19 [shape = 's32[1]{0}', space=sflag, size = 0x4, scoped, tag = 'scoped memory for tpu_custom_call.1']
    #allocation20 [shape = 'u8[65536]{0}', space=vmem, size = 0x10000, scoped, tag = 'output window, operand 0']
    %15 = vsyncpa [#allocation4], 0
    %s16 = scalar_lea.sflag [#allocation4], 1
    %17 = vsyncpa %s16, 0
    %18 = vsyncpa [#allocation7], 0
    %19 = vsyncpa [#allocation10], 0
    %20 = vsyncpa [#allocation13], 0
    %21 = vsyncpa [#allocation16], 0
    %22 = vsyncpa [#allocation19], 0
    %23 = vsyncpa [#allocation5], 0
    %s24 = scalar_lea.sflag [#allocation5], 1
    %25 = vsyncpa %s24, 0
    loop: start=0, step=1, limit=4
    $region2: #{tpu_custom_call.1} parent=1 // loop_pre_header
      _
    $region3: #{tpu_custom_call.1} parent=1 // loop_header
      %s27 = sphi 0, %s31
      %p28 = scmp.ge.s32.totalorder %s27, 4
      %s37 = sphi 0, %s39
      %s40 = sphi 0, %s37
      %s41 = sphi 0, %s40
      %s57 = sphi 0, %s41
      %s61 = sphi 0, %s61
      %s63 = sphi 0, %s61
      %s64 = sphi 0, %s63
      %s78 = sphi 0, %s64
      %s82 = sphi 0, %s82
      %s84 = sphi 0, %s82
      %s85 = sphi 0, %s84
      %s99 = sphi 0, %s85
      %s103 = sphi 0, %s103
      %s105 = sphi 0, %s103
      %s106 = sphi 0, %s105
      %s120 = sphi 0, %s106
      %s124 = sphi 0, %s124
      %s126 = sphi 0, %s124
      %s127 = sphi 0, %s126
      %s141 = sphi 0, %s127
      %s145 = sphi 0, %s145
      %s147 = sphi 0, %s145
      %s148 = sphi 0, %s147
      %s162 = sphi 0, %s148
      %s166 = sphi 0, %s166
      %s168 = sphi 0, %s166
      %s169 = sphi 0, %s168
      %s183 = sphi 0, %s169
      %s187 = sphi 0, %s187
      %s189 = sphi 0, %s187
      %s190 = sphi 0, %s189
      %s204 = sphi 0, %s190
      %s208 = sphi 0, %s208
      %s210 = sphi 0, %s208
      %s211 = sphi 0, %s210
      %s225 = sphi 0, %s211
      %s229 = sphi 0, %s229
      %s231 = sphi 0, %s229
      %s232 = sphi 0, %s231
      %s246 = sphi 0, %s232
      %s252 = sphi 0, %s254
      %s255 = sphi 0, %s252
      %s256 = sphi 0, %s255
      %s272 = sphi 0, %s256
    $region4: #{tpu_custom_call.1} parent=1 // loop_header_branch
      %30 = sbr.rel (%p28) target = $region8
    $region5: #{tpu_custom_call.1} parent=1 // loop_body
      %s32 = ssub.s32 %s27, 1
      %s33 = ssub.s32 %s27, 2
      %s34 = sadd.s32 %s27, 1
      %s35 = ssub.s32 %s27, %s34
      %p36 = scmp.eq.s32.totalorder %s35, 0
      %s38 = sadd.s32 %s37, 1
      %s39 = scalar_select %p36, %s37, %s38
      %p42 = pneg %p36
      %p43 = scmp.eq.s32.totalorder %s27, 1
      %p44 = por %p42, %p43
      %p45 = scmp.ne.s32.totalorder %s37, %s40
      %p46 = scmp.eq.s32.totalorder %s27, 0
      %p47 = por %p45, %p46
      %p48 = scmp.ne.s32.totalorder %s37, %s40
      %p49 = scmp.eq.s32.totalorder %s32, 1
      %p50 = por %p48, %p49
      %p51 = scmp.ne.s32.totalorder %s40, %s41
      %p52 = scmp.eq.s32.totalorder %s32, 0
      %p53 = por %p51, %p52
      %p54 = scmp.ne.s32.totalorder %s40, %s41
      %p55 = scmp.eq.s32.totalorder %s33, 1
      %p56 = por %p54, %p55
      %p58 = scmp.ne.s32.totalorder %s41, %s57
      %p59 = scmp.eq.s32.totalorder %s33, 0
      %p60 = por %p58, %p59
      %s62 = sadd.s32 %s61, 1
      %p65 = scmp.eq.s32.totalorder %s27, 1
      %p66 = scmp.ne.s32.totalorder %s61, %s63
      %p67 = scmp.eq.s32.totalorder %s27, 0
      %p68 = por %p66, %p67
      %p69 = scmp.ne.s32.totalorder %s61, %s63
      %p70 = scmp.eq.s32.totalorder %s32, 1
      %p71 = por %p69, %p70
      %p72 = scmp.ne.s32.totalorder %s63, %s64
      %p73 = scmp.eq.s32.totalorder %s32, 0
      %p74 = por %p72, %p73
      %p75 = scmp.ne.s32.totalorder %s63, %s64
      %p76 = scmp.eq.s32.totalorder %s33, 1
      %p77 = por %p75, %p76
      %p79 = scmp.ne.s32.totalorder %s64, %s78
      %p80 = scmp.eq.s32.totalorder %s33, 0
      %p81 = por %p79, %p80
      %s83 = sadd.s32 %s82, 1
      %p86 = scmp.eq.s32.totalorder %s27, 1
      %p87 = scmp.ne.s32.totalorder %s82, %s84
      %p88 = scmp.eq.s32.totalorder %s27, 0
      %p89 = por %p87, %p88
      %p90 = scmp.ne.s32.totalorder %s82, %s84
      %p91 = scmp.eq.s32.totalorder %s32, 1
      %p92 = por %p90, %p91
      %p93 = scmp.ne.s32.totalorder %s84, %s85
      %p94 = scmp.eq.s32.totalorder %s32, 0
      %p95 = por %p93, %p94
      %p96 = scmp.ne.s32.totalorder %s84, %s85
      %p97 = scmp.eq.s32.totalorder %s33, 1
      %p98 = por %p96, %p97
      %p100 = scmp.ne.s32.totalorder %s85, %s99
      %p101 = scmp.eq.s32.totalorder %s33, 0
      %p102 = por %p100, %p101
      %s104 = sadd.s32 %s103, 1
      %p107 = scmp.eq.s32.totalorder %s27, 1
      %p108 = scmp.ne.s32.totalorder %s103, %s105
      %p109 = scmp.eq.s32.totalorder %s27, 0
      %p110 = por %p108, %p109
      %p111 = scmp.ne.s32.totalorder %s103, %s105
      %p112 = scmp.eq.s32.totalorder %s32, 1
      %p113 = por %p111, %p112
      %p114 = scmp.ne.s32.totalorder %s105, %s106
      %p115 = scmp.eq.s32.totalorder %s32, 0
      %p116 = por %p114, %p115
      %p117 = scmp.ne.s32.totalorder %s105, %s106
      %p118 = scmp.eq.s32.totalorder %s33, 1
      %p119 = por %p117, %p118
      %p121 = scmp.ne.s32.totalorder %s106, %s120
      %p122 = scmp.eq.s32.totalorder %s33, 0
      %p123 = por %p121, %p122
      %s125 = sadd.s32 %s124, 1
      %p128 = scmp.eq.s32.totalorder %s27, 1
      %p129 = scmp.ne.s32.totalorder %s124, %s126
      %p130 = scmp.eq.s32.totalorder %s27, 0
      %p131 = por %p129, %p130
      %p132 = scmp.ne.s32.totalorder %s124, %s126
      %p133 = scmp.eq.s32.totalorder %s32, 1
      %p134 = por %p132, %p133
      %p135 = scmp.ne.s32.totalorder %s126, %s127
      %p136 = scmp.eq.s32.totalorder %s32, 0
      %p137 = por %p135, %p136
      %p138 = scmp.ne.s32.totalorder %s126, %s127
      %p139 = scmp.eq.s32.totalorder %s33, 1
      %p140 = por %p138, %p139
      %p142 = scmp.ne.s32.totalorder %s127, %s141
      %p143 = scmp.eq.s32.totalorder %s33, 0
      %p144 = por %p142, %p143
      %s146 = sadd.s32 %s145, 1
      %p149 = scmp.eq.s32.totalorder %s27, 1
      %p150 = scmp.ne.s32.totalorder %s145, %s147
      %p151 = scmp.eq.s32.totalorder %s27, 0
      %p152 = por %p150, %p151
      %p153 = scmp.ne.s32.totalorder %s145, %s147
      %p154 = scmp.eq.s32.totalorder %s32, 1
      %p155 = por %p153, %p154
      %p156 = scmp.ne.s32.totalorder %s147, %s148
      %p157 = scmp.eq.s32.totalorder %s32, 0
      %p158 = por %p156, %p157
      %p159 = scmp.ne.s32.totalorder %s147, %s148
      %p160 = scmp.eq.s32.totalorder %s33, 1
      %p161 = por %p159, %p160
      %p163 = scmp.ne.s32.totalorder %s148, %s162
      %p164 = scmp.eq.s32.totalorder %s33, 0
      %p165 = por %p163, %p164
      %s167 = sadd.s32 %s166, 1
      %p170 = scmp.eq.s32.totalorder %s27, 1
      %p171 = scmp.ne.s32.totalorder %s166, %s168
      %p172 = scmp.eq.s32.totalorder %s27, 0
      %p173 = por %p171, %p172
      %p174 = scmp.ne.s32.totalorder %s166, %s168
      %p175 = scmp.eq.s32.totalorder %s32, 1
      %p176 = por %p174, %p175
      %p177 = scmp.ne.s32.totalorder %s168, %s169
      %p178 = scmp.eq.s32.totalorder %s32, 0
      %p179 = por %p177, %p178
      %p180 = scmp.ne.s32.totalorder %s168, %s169
      %p181 = scmp.eq.s32.totalorder %s33, 1
      %p182 = por %p180, %p181
      %p184 = scmp.ne.s32.totalorder %s169, %s183
      %p185 = scmp.eq.s32.totalorder %s33, 0
      %p186 = por %p184, %p185
      %s188 = sadd.s32 %s187, 1
      %p191 = scmp.eq.s32.totalorder %s27, 1
      %p192 = scmp.ne.s32.totalorder %s187, %s189
      %p193 = scmp.eq.s32.totalorder %s27, 0
      %p194 = por %p192, %p193
      %p195 = scmp.ne.s32.totalorder %s187, %s189
      %p196 = scmp.eq.s32.totalorder %s32, 1
      %p197 = por %p195, %p196
      %p198 = scmp.ne.s32.totalorder %s189, %s190
      %p199 = scmp.eq.s32.totalorder %s32, 0
      %p200 = por %p198, %p199
      %p201 = scmp.ne.s32.totalorder %s189, %s190
      %p202 = scmp.eq.s32.totalorder %s33, 1
      %p203 = por %p201, %p202
      %p205 = scmp.ne.s32.totalorder %s190, %s204
      %p206 = scmp.eq.s32.totalorder %s33, 0
      %p207 = por %p205, %p206
      %s209 = sadd.s32 %s208, 1
      %p212 = scmp.eq.s32.totalorder %s27, 1
      %p213 = scmp.ne.s32.totalorder %s208, %s210
      %p214 = scmp.eq.s32.totalorder %s27, 0
      %p215 = por %p213, %p214
      %p216 = scmp.ne.s32.totalorder %s208, %s210
      %p217 = scmp.eq.s32.totalorder %s32, 1
      %p218 = por %p216, %p217
      %p219 = scmp.ne.s32.totalorder %s210, %s211
      %p220 = scmp.eq.s32.totalorder %s32, 0
      %p221 = por %p219, %p220
      %p222 = scmp.ne.s32.totalorder %s210, %s211
      %p223 = scmp.eq.s32.totalorder %s33, 1
      %p224 = por %p222, %p223
      %p226 = scmp.ne.s32.totalorder %s211, %s225
      %p227 = scmp.eq.s32.totalorder %s33, 0
      %p228 = por %p226, %p227
      %s230 = sadd.s32 %s229, 1
      %p233 = scmp.eq.s32.totalorder %s27, 1
      %p234 = scmp.ne.s32.totalorder %s229, %s231
      %p235 = scmp.eq.s32.totalorder %s27, 0
      %p236 = por %p234, %p235
      %p237 = scmp.ne.s32.totalorder %s229, %s231
      %p238 = scmp.eq.s32.totalorder %s32, 1
      %p239 = por %p237, %p238
      %p240 = scmp.ne.s32.totalorder %s231, %s232
      %p241 = scmp.eq.s32.totalorder %s32, 0
      %p242 = por %p240, %p241
      %p243 = scmp.ne.s32.totalorder %s231, %s232
      %p244 = scmp.eq.s32.totalorder %s33, 1
      %p245 = por %p243, %p244
      %p247 = scmp.ne.s32.totalorder %s232, %s246
      %p248 = scmp.eq.s32.totalorder %s33, 0
      %p249 = por %p247, %p248
      %s250 = ssub.s32 %s27, %s34
      %p251 = scmp.eq.s32.totalorder %s250, 0
      %s253 = sadd.s32 %s252, 1
      %s254 = scalar_select %p251, %s252, %s253
      %p257 = pneg %p251
      %p258 = scmp.eq.s32.totalorder %s27, 1
      %p259 = por %p257, %p258
      %p260 = scmp.ne.s32.totalorder %s252, %s255
      %p261 = scmp.eq.s32.totalorder %s27, 0
      %p262 = por %p260, %p261
      %p263 = scmp.ne.s32.totalorder %s252, %s255
      %p264 = scmp.eq.s32.totalorder %s32, 1
      %p265 = por %p263, %p264
      %p266 = scmp.ne.s32.totalorder %s255, %s256
      %p267 = scmp.eq.s32.totalorder %s32, 0
      %p268 = por %p266, %p267
      %p269 = scmp.ne.s32.totalorder %s255, %s256
      %p270 = scmp.eq.s32.totalorder %s33, 1
      %p271 = por %p269, %p270
      %p273 = scmp.ne.s32.totalorder %s256, %s272
      %p274 = scmp.eq.s32.totalorder %s33, 0
      %p275 = por %p273, %p274
      %p276 = scmp.le.s32.totalorder 1, %s27
      %p277 = scmp.lt.s32.totalorder %s27, 3
      %p278 = pnand %p276, %p277
      %p279 = pneg %p278
      // Predicated region
      $region9: #{tpu_custom_call.1} parent=5 // pred_check
        _
      $region10: #{tpu_custom_call.1} parent=5 // pred_check_branch
        %281 = sbr.rel (%p278) target = $region12
      $region11: #{tpu_custom_call.1} parent=5 // pred_region
        %s282 = ssub.s32 %s27, 1
        // Predicated region
        $region13: #{tpu_custom_call.1} parent=11 // pred_check
          %p283 = pneg %p74
        $region14: #{tpu_custom_call.1} parent=11 // pred_check_branch
          %285 = sbr.rel (%p283) target = $region16
        $region15: #{tpu_custom_call.1} parent=11 // pred_region
          %s287 = ssub.s32 1024, 1024
          %288 = vsyncadd [#allocation7], %s287
          %s289 = sshll.u32 [#allocation6], 4
          %s290 = int_to_ptr.vmem [resolvable:$true] %s289
          %295 = dma.hbm_to_vmem [thread:$0]  %s1, 1024, %s290, [#allocation7], 64, 64, 4
        $region16: #{tpu_custom_call.1} parent=11 // pred_fallthru
          _
        // Predicated region
        $region17: #{tpu_custom_call.1} parent=11 // pred_check
          %p296 = pneg %p95
        $region18: #{tpu_custom_call.1} parent=11 // pred_check_branch
          %298 = sbr.rel (%p296) target = $region20
        $region19: #{tpu_custom_call.1} parent=11 // pred_region
          %s300 = ssub.s32 16, 16
          %301 = vsyncadd [#allocation7], %s300
          %s303 = sshll.u32 [#allocation8], 4
          %s304 = int_to_ptr.vmem [resolvable:$true] %s303
          %306 = dma.hbm_to_vmem [thread:$0]  %s2, 16, %s304, [#allocation7]
        $region20: #{tpu_custom_call.1} parent=11 // pred_fallthru
          _
        // Predicated region
        $region21: #{tpu_custom_call.1} parent=11 // pred_check
          %p307 = pneg %p116
        $region22: #{tpu_custom_call.1} parent=11 // pred_check_branch
          %309 = sbr.rel (%p307) target = $region24
        $region23: #{tpu_custom_call.1} parent=11 // pred_region
          %s311 = ssub.s32 16, 16
          %312 = vsyncadd [#allocation10], %s311
          %s314 = sshll.u32 [#allocation9], 4
          %s315 = int_to_ptr.vmem [resolvable:$true] %s314
          %317 = dma.hbm_to_vmem [thread:$0]  %s3, 16, %s315, [#allocation10]
        $region24: #{tpu_custom_call.1} parent=11 // pred_fallthru
          _
        // Predicated region
        $region25: #{tpu_custom_call.1} parent=11 // pred_check
          %p318 = pneg %p137
        $region26: #{tpu_custom_call.1} parent=11 // pred_check_branch
          %320 = sbr.rel (%p318) target = $region28
        $region27: #{tpu_custom_call.1} parent=11 // pred_region
          %s322 = ssub.s32 9216, 9216
          %323 = vsyncadd [#allocation10], %s322
          %s324 = sshll.u32 [#allocation11], 4
          %s325 = int_to_ptr.vmem [resolvable:$true] %s324
          %330 = dma.hbm_to_vmem [thread:$0]  %s4, 9216, %s325, [#allocation10], 64, 64, 4
        $region28: #{tpu_custom_call.1} parent=11 // pred_fallthru
          _
        // Predicated region
        $region29: #{tpu_custom_call.1} parent=11 // pred_check
          %p331 = pneg %p158
        $region30: #{tpu_custom_call.1} parent=11 // pred_check_branch
          %333 = sbr.rel (%p331) target = $region32
        $region31: #{tpu_custom_call.1} parent=11 // pred_region
          %s335 = ssub.s32 16, 16
          %336 = vsyncadd [#allocation13], %s335
          %s338 = sshll.u32 [#allocation12], 4
          %s339 = int_to_ptr.vmem [resolvable:$true] %s338
          %341 = dma.hbm_to_vmem [thread:$0]  %s5, 16, %s339, [#allocation13]
        $region32: #{tpu_custom_call.1} parent=11 // pred_fallthru
          _
        // Predicated region
        $region33: #{tpu_custom_call.1} parent=11 // pred_check
          %p342 = pneg %p179
        $region34: #{tpu_custom_call.1} parent=11 // pred_check_branch
          %344 = sbr.rel (%p342) target = $region36
        $region35: #{tpu_custom_call.1} parent=11 // pred_region
          %s346 = ssub.s32 16, 16
          %347 = vsyncadd [#allocation13], %s346
          %s349 = sshll.u32 [#allocation14], 4
          %s350 = int_to_ptr.vmem [resolvable:$true] %s349
          %352 = dma.hbm_to_vmem [thread:$0]  %s6, 16, %s350, [#allocation13]
        $region36: #{tpu_custom_call.1} parent=11 // pred_fallthru
          _
        // Predicated region
        $region37: #{tpu_custom_call.1} parent=11 // pred_check
          %p353 = pneg %p200
        $region38: #{tpu_custom_call.1} parent=11 // pred_check_branch
          %355 = sbr.rel (%p353) target = $region40
        $region39: #{tpu_custom_call.1} parent=11 // pred_region
          %s357 = ssub.s32 1024, 1024
          %358 = vsyncadd [#allocation16], %s357
          %s359 = sshll.u32 [#allocation15], 4
          %s360 = int_to_ptr.vmem [resolvable:$true] %s359
          %365 = dma.hbm_to_vmem [thread:$0]  %s7, 1024, %s360, [#allocation16], 64, 64, 4
        $region40: #{tpu_custom_call.1} parent=11 // pred_fallthru
          _
        // Predicated region
        $region41: #{tpu_custom_call.1} parent=11 // pred_check
          %p366 = pneg %p221
        $region42: #{tpu_custom_call.1} parent=11 // pred_check_branch
          %368 = sbr.rel (%p366) target = $region44
        $region43: #{tpu_custom_call.1} parent=11 // pred_region
          %s370 = ssub.s32 16, 16
          %371 = vsyncadd [#allocation16], %s370
          %s373 = sshll.u32 [#allocation17], 4
          %s374 = int_to_ptr.vmem [resolvable:$true] %s373
          %376 = dma.hbm_to_vmem [thread:$0]  %s8, 16, %s374, [#allocation16]
        $region44: #{tpu_custom_call.1} parent=11 // pred_fallthru
          _
        // Predicated region
        $region45: #{tpu_custom_call.1} parent=11 // pred_check
          %p377 = pneg %p242
        $region46: #{tpu_custom_call.1} parent=11 // pred_check_branch
          %379 = sbr.rel (%p377) target = $region48
        $region47: #{tpu_custom_call.1} parent=11 // pred_region
          %s381 = ssub.s32 16, 16
          %382 = vsyncadd [#allocation19], %s381
          %s384 = sshll.u32 [#allocation18], 4
          %s385 = int_to_ptr.vmem [resolvable:$true] %s384
          %387 = dma.hbm_to_vmem [thread:$0]  %s9, 16, %s385, [#allocation19]
        $region48: #{tpu_custom_call.1} parent=11 // pred_fallthru
          _
      $region12: #{tpu_custom_call.1} parent=5 // pred_fallthru
        _
      %p388 = scmp.lt.s32.totalorder %s27, 2
      // Predicated region
      $region49: #{tpu_custom_call.1} parent=5 // pred_check
        %p389 = pneg %p388
      $region50: #{tpu_custom_call.1} parent=5 // pred_check_branch
        %391 = sbr.rel (%p389) target = $region52
      $region51: #{tpu_custom_call.1} parent=5 // pred_region
        // Predicated region
        $region53: #{tpu_custom_call.1} parent=51 // pred_check
          %p392 = pneg %p47
        $region54: #{tpu_custom_call.1} parent=51 // pred_check_branch
          %394 = sbr.rel (%p392) target = $region56
        $region55: #{tpu_custom_call.1} parent=51 // pred_region
          %s395 = sand.u32 %s37, 1
          %s396 = scalar_lea.sflag [#allocation4], %s395
          %s397 = sand.u32 %s37, 1
          %s398 = smul.addr %s397, 64
          %s399 = scalar_lea.vmem [#allocation3], %s398
          %s401 = ssub.s32 1024, 1024
          %402 = vsyncadd %s396, %s401
          %s403 = smul.addr %s27, 8
          %s404 = smul.addr %s403, 128
          %s405 = scalar_lea.hbm %s0, %s404
          %s406 = sshll.u32 %s399, 4
          %s407 = int_to_ptr.vmem [resolvable:$true] %s406
          %412 = dma.hbm_to_vmem [thread:$0]  %s405, 1024, %s407, %s396, 128, 128, 8
        $region56: #{tpu_custom_call.1} parent=51 // pred_fallthru
          _
      $region52: #{tpu_custom_call.1} parent=5 // pred_fallthru
        _
      %p413 = scmp.le.s32.totalorder 1, %s27
      %p414 = scmp.lt.s32.totalorder %s27, 3
      %p415 = pnand %p413, %p414
      %p416 = pneg %p415
      // Predicated region
      $region57: #{tpu_custom_call.1} parent=5 // pred_check
        _
      $region58: #{tpu_custom_call.1} parent=5 // pred_check_branch
        %418 = sbr.rel (%p415) target = $region60
      $region59: #{tpu_custom_call.1} parent=5 // pred_region
        %s419 = ssub.s32 %s27, 1
        %s420 = sand.u32 %s40, 1
        %s421 = scalar_lea.sflag [#allocation4], %s420
        %s422 = sand.u32 %s40, 1
        %s423 = smul.addr %s422, 64
        %s424 = scalar_lea.vmem [#allocation3], %s423
        // Predicated region
        $region61: #{tpu_custom_call.1} parent=59 // pred_check
          %p425 = pneg %p53
        $region62: #{tpu_custom_call.1} parent=59 // pred_check_branch
          %427 = sbr.rel (%p425) target = $region64
        $region63: #{tpu_custom_call.1} parent=59 // pred_region
          %428 = dma.done %s421, 1024
        $region64: #{tpu_custom_call.1} parent=59 // pred_fallthru
          _
        // Predicated region
        $region65: #{tpu_custom_call.1} parent=59 // pred_check
          %p429 = pneg %p74
        $region66: #{tpu_custom_call.1} parent=59 // pred_check_branch
          %431 = sbr.rel (%p429) target = $region68
        $region67: #{tpu_custom_call.1} parent=59 // pred_region
          %432 = dma.done [#allocation7], 1024
        $region68: #{tpu_custom_call.1} parent=59 // pred_fallthru
          _
        // Predicated region
        $region69: #{tpu_custom_call.1} parent=59 // pred_check
          %p433 = pneg %p95
        $region70: #{tpu_custom_call.1} parent=59 // pred_check_branch
          %435 = sbr.rel (%p433) target = $region72
        $region71: #{tpu_custom_call.1} parent=59 // pred_region
          %436 = dma.done [#allocation7], 16
        $region72: #{tpu_custom_call.1} parent=59 // pred_fallthru
          _
        // Predicated region
        $region73: #{tpu_custom_call.1} parent=59 // pred_check
          %p437 = pneg %p116
        $region74: #{tpu_custom_call.1} parent=59 // pred_check_branch
          %439 = sbr.rel (%p437) target = $region76
        $region75: #{tpu_custom_call.1} parent=59 // pred_region
          %440 = dma.done [#allocation10], 16
        $region76: #{tpu_custom_call.1} parent=59 // pred_fallthru
          _
        // Predicated region
        $region77: #{tpu_custom_call.1} parent=59 // pred_check
          %p441 = pneg %p137
        $region78: #{tpu_custom_call.1} parent=59 // pred_check_branch
          %443 = sbr.rel (%p441) target = $region80
        $region79: #{tpu_custom_call.1} parent=59 // pred_region
          %444 = dma.done [#allocation10], 9216
        $region80: #{tpu_custom_call.1} parent=59 // pred_fallthru
          _
        // Predicated region
        $region81: #{tpu_custom_call.1} parent=59 // pred_check
          %p445 = pneg %p158
        $region82: #{tpu_custom_call.1} parent=59 // pred_check_branch
          %447 = sbr.rel (%p445) target = $region84
        $region83: #{tpu_custom_call.1} parent=59 // pred_region
          %448 = dma.done [#allocation13], 16
        $region84: #{tpu_custom_call.1} parent=59 // pred_fallthru
          _
        // Predicated region
        $region85: #{tpu_custom_call.1} parent=59 // pred_check
          %p449 = pneg %p179
        $region86: #{tpu_custom_call.1} parent=59 // pred_check_branch
          %451 = sbr.rel (%p449) target = $region88
        $region87: #{tpu_custom_call.1} parent=59 // pred_region
          %452 = dma.done [#allocation13], 16
        $region88: #{tpu_custom_call.1} parent=59 // pred_fallthru
          _
        // Predicated region
        $region89: #{tpu_custom_call.1} parent=59 // pred_check
          %p453 = pneg %p200
        $region90: #{tpu_custom_call.1} parent=59 // pred_check_branch
          %455 = sbr.rel (%p453) target = $region92
        $region91: #{tpu_custom_call.1} parent=59 // pred_region
          %456 = dma.done [#allocation16], 1024
        $region92: #{tpu_custom_call.1} parent=59 // pred_fallthru
          _
        // Predicated region
        $region93: #{tpu_custom_call.1} parent=59 // pred_check
          %p457 = pneg %p221
        $region94: #{tpu_custom_call.1} parent=59 // pred_check_branch
          %459 = sbr.rel (%p457) target = $region96
        $region95: #{tpu_custom_call.1} parent=59 // pred_region
          %460 = dma.done [#allocation16], 16
        $region96: #{tpu_custom_call.1} parent=59 // pred_fallthru
          _
        // Predicated region
        $region97: #{tpu_custom_call.1} parent=59 // pred_check
          %p461 = pneg %p242
        $region98: #{tpu_custom_call.1} parent=59 // pred_check_branch
          %463 = sbr.rel (%p461) target = $region100
        $region99: #{tpu_custom_call.1} parent=59 // pred_region
          %464 = dma.done [#allocation19], 16
        $region100: #{tpu_custom_call.1} parent=59 // pred_fallthru
          _
        %s465 = sand.u32 %s40, 1
        %s466 = scalar_lea.sflag [#allocation4], %s465
        %s467 = sand.u32 %s40, 1
        %s468 = smul.addr %s467, 64
        %s469 = scalar_lea.vmem [#allocation3], %s468
        %p470 = pneg %p53
        %p471 = pneg %p50
        %p472 = pneg %p74
        %p473 = pneg %p71
        %p474 = pneg %p95
        %p475 = pneg %p92
        %p476 = pneg %p116
        %p477 = pneg %p113
        %p478 = pneg %p137
        %p479 = pneg %p134
        %p480 = pneg %p158
        %p481 = pneg %p155
        %p482 = pneg %p179
        %p483 = pneg %p176
        %p484 = pneg %p200
        %p485 = pneg %p197
        %p486 = pneg %p221
        %p487 = pneg %p218
        %p488 = pneg %p242
        %p489 = pneg %p239
        %p490 = pneg %p268
        %p491 = pneg %p265
        %s492 = sand.u32 %s255, 1
        %s493 = scalar_lea.sflag [#allocation5], %s492
        %s494 = sand.u32 %s255, 1
        %s495 = smul.addr %s494, 64
        %s496 = scalar_lea.vmem [#allocation20], %s495
        %v498 = vld [vmem:[%s424] sm:$0xff]
        %v499 = vld [vmem:[%s424 + $0x8] sm:$0xff]
        %v500 = vld [vmem:[%s424 + $0x10] sm:$0xff]
        %v501 = vld [vmem:[%s424 + $0x18] sm:$0xff]
        %v502 = vld [vmem:[%s424 + $0x20] sm:$0xff]
        %v503 = vld [vmem:[%s424 + $0x28] sm:$0xff]
        %v504 = vld [vmem:[%s424 + $0x30] sm:$0xff]
        %v505 = vld [vmem:[%s424 + $0x38] sm:$0xff]
        %v506 = vpack.c.bf16 %v499, %v498
        %v507 = vpack.c.bf16 %v501, %v500
        %v508 = vpack.c.bf16 %v503, %v502
        %v509 = vpack.c.bf16 %v505, %v504
        %v510 = vld [vmem:[#allocation6] sm:$0xf]
        %v511 = vld [vmem:[#allocation6 + $0x4] sm:$0xf]
        %v512 = vld [vmem:[#allocation6 + $0x8] sm:$0xf]
        %v513 = vld [vmem:[#allocation6 + $0xc] sm:$0xf]
        %v514 = vld [vmem:[#allocation6 + $0x10] sm:$0xf]
        %v515 = vld [vmem:[#allocation6 + $0x14] sm:$0xf]
        %v516 = vld [vmem:[#allocation6 + $0x18] sm:$0xf]
        %v517 = vld [vmem:[#allocation6 + $0x1c] sm:$0xf]
        %v518 = vld [vmem:[#allocation6 + $0x20] sm:$0xf]
        %v519 = vld [vmem:[#allocation6 + $0x24] sm:$0xf]
        %v520 = vld [vmem:[#allocation6 + $0x28] sm:$0xf]
        %v521 = vld [vmem:[#allocation6 + $0x2c] sm:$0xf]
        %v522 = vld [vmem:[#allocation6 + $0x30] sm:$0xf]
        %v523 = vld [vmem:[#allocation6 + $0x34] sm:$0xf]
        %v524 = vld [vmem:[#allocation6 + $0x38] sm:$0xf]
        %v525 = vld [vmem:[#allocation6 + $0x3c] sm:$0xf]
        %v542 = vunpack.c.l.b16 %v510
        %v543 = vunpack.c.l.b16 %v511
        %v544 = vunpack.c.l.b16 %v512
        %v545 = vunpack.c.l.b16 %v513
        %v546 = vunpack.c.l.b16 %v514
        %v547 = vunpack.c.l.b16 %v515
        %v548 = vunpack.c.l.b16 %v516
        %v549 = vunpack.c.l.b16 %v517
        %v550 = vunpack.c.l.b16 %v518
        %v551 = vunpack.c.l.b16 %v519
        %v552 = vunpack.c.l.b16 %v520
        %v553 = vunpack.c.l.b16 %v521
        %v554 = vunpack.c.l.b16 %v522
        %v555 = vunpack.c.l.b16 %v523
        %v556 = vunpack.c.l.b16 %v524
        %v557 = vunpack.c.l.b16 %v525
        %v558 = vpack.c.b16 %v543, %v542
        %v559 = vpack.c.b16 %v545, %v544
        %v560 = vpack.c.b16 %v547, %v546
        %v561 = vpack.c.b16 %v549, %v548
        %v562 = vpack.c.b16 %v551, %v550
        %v563 = vpack.c.b16 %v553, %v552
        %v564 = vpack.c.b16 %v555, %v554
        %v565 = vpack.c.b16 %v557, %v556
        %574 = vmatprep.subr.bf16.mxu0 0
        %575 = vmatpush1.bf16.msra.mxu0 %v558
        %576 = vmatprep.subr.bf16.mxu0 0
        %577 = vmatpush1.bf16.msra.mxu0 %v559
        %578 = vmatprep.subr.bf16.mxu0 0
        %579 = vmatpush1.bf16.msra.mxu0 %v560
        %580 = vmatprep.subr.bf16.mxu0 0
        %581 = vmatpush1.bf16.msra.mxu0 %v561
        %582 = vmatprep.subr.bf16.mxu0 0
        %583 = vmatpush1.bf16.msra.mxu0 %v562
        %584 = vmatprep.subr.bf16.mxu0 0
        %585 = vmatpush1.bf16.msra.mxu0 %v563
        %586 = vmatprep.subr.bf16.mxu0 0
        %587 = vmatpush1.bf16.msra.mxu0 %v564
        %588 = vmatprep.subr.bf16.mxu0 0
        %589 = vmatpush1.bf16.msra.mxu0 %v565
        %590 = vmatprep.subr.bf16.mxu0 0
        %591 = vmatpush1.bf16.msra.mxu0 0
        %592 = vmatprep.subr.bf16.mxu0 0
        %593 = vmatpush1.bf16.msra.mxu0 0
        %594 = vmatprep.subr.bf16.mxu0 0
        %595 = vmatpush1.bf16.msra.mxu0 0
        %596 = vmatprep.subr.bf16.mxu0 0
        %597 = vmatpush1.bf16.msra.mxu0 0
        %598 = vmatprep.subr.bf16.mxu0 0
        %599 = vmatpush1.bf16.msra.mxu0 0
        %600 = vmatprep.subr.bf16.mxu0 0
        %601 = vmatpush1.bf16.msra.mxu0 0
        %602 = vmatprep.subr.bf16.mxu0 0
        %603 = vmatpush1.bf16.msra.mxu0 0
        %604 = vmatprep.subr.bf16.mxu0 0
        %605 = vmatpush1.bf16.msra.mxu0 0
        %606 = vmatprep.mubr.bf16.mxu0 0
        %607 = vmatmul.mubr.bf16.gmra.mrb[0].mxu0 %v506
        %v608 = vpop.f32.mrb[0].mxu0
        %v609 = vadd.f32 0.0, %v608
        %v610 = vpop.f32.mrb[0].mxu0
        %v611 = vpop.f32.mrb[0].mxu0
        %v612 = vadd.f32 0.0, %v611
        %v613 = vpop.f32.mrb[0].mxu0
        %614 = vmatprep.mubr.bf16.mxu0 0
        %615 = vmatmul.mubr.bf16.gmra.mrb[0].mxu0 %v507
        %v616 = vpop.f32.mrb[0].mxu0
        %v617 = vadd.f32 0.0, %v616
        %v618 = vpop.f32.mrb[0].mxu0
        %v619 = vpop.f32.mrb[0].mxu0
        %v620 = vadd.f32 0.0, %v619
        %v621 = vpop.f32.mrb[0].mxu0
        %622 = vmatprep.mubr.bf16.mxu0 0
        %623 = vmatmul.mubr.bf16.gmra.mrb[0].mxu0 %v508
        %v624 = vpop.f32.mrb[0].mxu0
        %v625 = vadd.f32 0.0, %v624
        %v626 = vpop.f32.mrb[0].mxu0
        %v627 = vpop.f32.mrb[0].mxu0
        %v628 = vadd.f32 0.0, %v627
        %v629 = vpop.f32.mrb[0].mxu0
        %630 = vmatprep.mubr.bf16.mxu0 0
        %631 = vmatmul.mubr.bf16.gmra.mrb[0].mxu0 %v509
        %v632 = vpop.f32.mrb[0].mxu0
        %v633 = vadd.f32 0.0, %v632
        %v634 = vpop.f32.mrb[0].mxu0
        %v635 = vpop.f32.mrb[0].mxu0
        %v636 = vadd.f32 0.0, %v635
        %v637 = vpop.f32.mrb[0].mxu0
        %638 = vdwg.mxu0
        %v639 = vld [vmem:[#allocation8] sm:$0x1]
        %v641 = vlaneseq
        %v642 = vshrl.u32 %v641, 7
        %v643 = vsub.s32 0, %v642
        %v644 = vrot.slane %v639, %v643
        %v646 = vmul.f32 %v609, %v644
        %v647 = vmul.f32 %v612, %v644
        %v648 = vmul.f32 %v617, %v644
        %v649 = vmul.f32 %v620, %v644
        %v650 = vmul.f32 %v625, %v644
        %v651 = vmul.f32 %v628, %v644
        %v652 = vmul.f32 %v633, %v644
        %v653 = vmul.f32 %v636, %v644
        %v654 = vld [vmem:[#allocation9] sm:$0x1]
        %v656 = vlaneseq
        %v657 = vshrl.u32 %v656, 7
        %v658 = vsub.s32 0, %v657
        %v659 = vrot.slane %v654, %v658
        %v661 = vadd.f32 %v646, %v659
        %v662 = vadd.f32 %v647, %v659
        %v663 = vadd.f32 %v648, %v659
        %v664 = vadd.f32 %v649, %v659
        %v665 = vadd.f32 %v650, %v659
        %v666 = vadd.f32 %v651, %v659
        %v667 = vadd.f32 %v652, %v659
        %v668 = vadd.f32 %v653, %v659
        %v669 = vmax.f32 %v661, 0.0
        %v670 = vmax.f32 %v662, 0.0
        %v671 = vmax.f32 %v663, 0.0
        %v672 = vmax.f32 %v664, 0.0
        %v673 = vmax.f32 %v665, 0.0
        %v674 = vmax.f32 %v666, 0.0
        %v675 = vmax.f32 %v667, 0.0
        %v676 = vmax.f32 %v668, 0.0
        %677 = vst [vmem:[#allocation2] sm:$0xf] 0
        %678 = vst [vmem:[#allocation2 + $0x4] sm:$0x1] 0
        %s679 = scalar_lea.vmem [#allocation2], 72
        %680 = vst [vmem:[%s679] sm:$0xf] 0
        %681 = vst [vmem:[%s679 + $0x4] sm:$0x1] 0
        %vm682 = vcmask 1040384
        %vm683 = vsmask.f32 256
        %vm684 = vmand %vm682, %vm683
        %v685 = vld [vmem:[#allocation2] sm:$0x1]
        %v686 = vsel %vm684, 0, %v685
        %687 = vst [vmem:[#allocation2] sm:$0x1] %v686
        %v688 = vld [vmem:[#allocation2 + $0x8] sm:$0x1]
        %v689 = vsel %vm684, 0, %v688
        %690 = vst [vmem:[#allocation2 + $0x8] sm:$0x1] %v689
        %v691 = vld [vmem:[#allocation2 + $0x10] sm:$0x1]
        %v692 = vsel %vm684, 0, %v691
        %693 = vst [vmem:[#allocation2 + $0x10] sm:$0x1] %v692
        %v694 = vld [vmem:[#allocation2 + $0x18] sm:$0x1]
        %v695 = vsel %vm684, 0, %v694
        %696 = vst [vmem:[#allocation2 + $0x18] sm:$0x1] %v695
        %v697 = vld [vmem:[#allocation2 + $0x20] sm:$0x1]
        %v698 = vsel %vm684, 0, %v697
        %699 = vst [vmem:[#allocation2 + $0x20] sm:$0x1] %v698
        %v700 = vld [vmem:[#allocation2 + $0x28] sm:$0x1]
        %v701 = vsel %vm684, 0, %v700
        %702 = vst [vmem:[#allocation2 + $0x28] sm:$0x1] %v701
        %v703 = vld [vmem:[#allocation2 + $0x30] sm:$0x1]
        %v704 = vsel %vm684, 0, %v703
        %705 = vst [vmem:[#allocation2 + $0x30] sm:$0x1] %v704
        %v706 = vld [vmem:[#allocation2 + $0x38] sm:$0x1]
        %v707 = vsel %vm684, 0, %v706
        %708 = vst [vmem:[#allocation2 + $0x38] sm:$0x1] %v707
        %v709 = vld [vmem:[#allocation2 + $0x40] sm:$0x1]
        %v710 = vsel %vm684, 0, %v709
        %711 = vst [vmem:[#allocation2 + $0x40] sm:$0x1] %v710
        %v712 = vld [vmem:[#allocation2 + $0x48] sm:$0x1]
        %v713 = vsel %vm684, 0, %v712
        %714 = vst [vmem:[#allocation2 + $0x48] sm:$0x1] %v713
        %vm715 = vsmask.f32 7938
        %vm716 = vmand %vm682, %vm715
        %v717 = vld [vmem:[#allocation2 + $0x4] sm:$0x1]
        %v718 = vsel %vm716, 0, %v717
        %719 = vst [vmem:[#allocation2 + $0x4] sm:$0x1] %v718
        %v720 = vld [vmem:[#allocation2 + $0xc] sm:$0x1]
        %v721 = vsel %vm716, 0, %v720
        %722 = vst [vmem:[#allocation2 + $0xc] sm:$0x1] %v721
        %v723 = vld [vmem:[#allocation2 + $0x14] sm:$0x1]
        %v724 = vsel %vm716, 0, %v723
        %725 = vst [vmem:[#allocation2 + $0x14] sm:$0x1] %v724
        %v726 = vld [vmem:[#allocation2 + $0x1c] sm:$0x1]
        %v727 = vsel %vm716, 0, %v726
        %728 = vst [vmem:[#allocation2 + $0x1c] sm:$0x1] %v727
        %v729 = vld [vmem:[#allocation2 + $0x24] sm:$0x1]
        %v730 = vsel %vm716, 0, %v729
        %731 = vst [vmem:[#allocation2 + $0x24] sm:$0x1] %v730
        %v732 = vld [vmem:[#allocation2 + $0x2c] sm:$0x1]
        %v733 = vsel %vm716, 0, %v732
        %734 = vst [vmem:[#allocation2 + $0x2c] sm:$0x1] %v733
        %v735 = vld [vmem:[#allocation2 + $0x34] sm:$0x1]
        %v736 = vsel %vm716, 0, %v735
        %737 = vst [vmem:[#allocation2 + $0x34] sm:$0x1] %v736
        %v738 = vld [vmem:[#allocation2 + $0x3c] sm:$0x1]
        %v739 = vsel %vm716, 0, %v738
        %740 = vst [vmem:[#allocation2 + $0x3c] sm:$0x1] %v739
        %v741 = vld [vmem:[#allocation2 + $0x44] sm:$0x1]
        %v742 = vsel %vm716, 0, %v741
        %743 = vst [vmem:[#allocation2 + $0x44] sm:$0x1] %v742
        %v744 = vld [vmem:[#allocation2 + $0x4c] sm:$0x1]
        %v745 = vsel %vm716, 0, %v744
        %746 = vst [vmem:[#allocation2 + $0x4c] sm:$0x1] %v745
        %v747 = vpack.c.bf16 %v670, %v669
        %v748 = vpack.c.bf16 %v672, %v671
        %v749 = vpack.c.bf16 %v674, %v673
        %v750 = vpack.c.bf16 %v676, %v675
        %v755 = vunpack.c.l.b16 %v747
        %v756 = vunpack.c.h.b16 %v747
        %v757 = vunpack.c.l.b16 %v748
        %v758 = vunpack.c.h.b16 %v748
        %v759 = vunpack.c.l.b16 %v749
        %v760 = vunpack.c.h.b16 %v749
        %v761 = vunpack.c.l.b16 %v750
        %v762 = vunpack.c.h.b16 %v750
        %v763 = vpack.c.b16 %v755, %v755
        %v764 = vpack.c.b16 %v756, %v756
        %v765 = vpack.c.b16 %v757, %v757
        %v766 = vpack.c.b16 %v758, %v758
        %v767 = vpack.c.b16 %v759, %v759
        %v768 = vpack.c.b16 %v760, %v760
        %v769 = vpack.c.b16 %v761, %v761
        %v770 = vpack.c.b16 %v762, %v762
        %v772 = vshrl.u32 %v763, 16
        %v774 = vrot.slane %v772, 7
        %v775 = vshll.u32 %v763, 16
        %v777 = vor.u32 %v774, %v775
        %v778 = vrot.slane %v774, 4
        %v780 = vshrl.u32 %v764, 16
        %v782 = vrot.slane %v780, 7
        %v783 = vshll.u32 %v764, 16
        %v785 = vor.u32 %v782, %v783
        %v786 = vrot.slane %v782, 4
        %v788 = vshrl.u32 %v765, 16
        %v790 = vrot.slane %v788, 7
        %v791 = vshll.u32 %v765, 16
        %v793 = vor.u32 %v790, %v791
        %v794 = vrot.slane %v790, 4
        %v796 = vshrl.u32 %v766, 16
        %v798 = vrot.slane %v796, 7
        %v799 = vshll.u32 %v766, 16
        %v801 = vor.u32 %v798, %v799
        %v802 = vrot.slane %v798, 4
        %v804 = vshrl.u32 %v767, 16
        %v806 = vrot.slane %v804, 7
        %v807 = vshll.u32 %v767, 16
        %v809 = vor.u32 %v806, %v807
        %v810 = vrot.slane %v806, 4
        %v812 = vshrl.u32 %v768, 16
        %v814 = vrot.slane %v812, 7
        %v815 = vshll.u32 %v768, 16
        %v817 = vor.u32 %v814, %v815
        %v818 = vrot.slane %v814, 4
        %v820 = vshrl.u32 %v769, 16
        %v822 = vrot.slane %v820, 7
        %v823 = vshll.u32 %v769, 16
        %v825 = vor.u32 %v822, %v823
        %v826 = vrot.slane %v822, 4
        %v828 = vshrl.u32 %v770, 16
        %v830 = vrot.slane %v828, 7
        %v831 = vshll.u32 %v770, 16
        %v833 = vor.u32 %v830, %v831
        %v834 = vrot.slane %v830, 4
        %s851 = scalar_lea.vmem [#allocation2], 8
        %vm852 = vcmask 1043456
        %vm853 = vmand %vm852, %vm715
        %v854 = vld [vmem:[%s851] sm:$0xf]
        %v855 = vsel %vm853, %v777, %v854
        %856 = vst [vmem:[%s851] sm:$0xf] %v855
        %v857 = vld [vmem:[%s851 + $0x4] sm:$0x1]
        %v858 = vsel %vm684, %v778, %v857
        %859 = vst [vmem:[%s851 + $0x4] sm:$0x1] %v858
        %v860 = vld [vmem:[%s851 + $0x8] sm:$0xf]
        %v861 = vsel %vm853, %v785, %v860
        %862 = vst [vmem:[%s851 + $0x8] sm:$0xf] %v861
        %v863 = vld [vmem:[%s851 + $0xc] sm:$0x1]
        %v864 = vsel %vm684, %v786, %v863
        %865 = vst [vmem:[%s851 + $0xc] sm:$0x1] %v864
        %v866 = vld [vmem:[%s851 + $0x10] sm:$0xf]
        %v867 = vsel %vm853, %v793, %v866
        %868 = vst [vmem:[%s851 + $0x10] sm:$0xf] %v867
        %v869 = vld [vmem:[%s851 + $0x14] sm:$0x1]
        %v870 = vsel %vm684, %v794, %v869
        %871 = vst [vmem:[%s851 + $0x14] sm:$0x1] %v870
        %v872 = vld [vmem:[%s851 + $0x18] sm:$0xf]
        %v873 = vsel %vm853, %v801, %v872
        %874 = vst [vmem:[%s851 + $0x18] sm:$0xf] %v873
        %v875 = vld [vmem:[%s851 + $0x1c] sm:$0x1]
        %v876 = vsel %vm684, %v802, %v875
        %877 = vst [vmem:[%s851 + $0x1c] sm:$0x1] %v876
        %v878 = vld [vmem:[%s851 + $0x20] sm:$0xf]
        %v879 = vsel %vm853, %v809, %v878
        %880 = vst [vmem:[%s851 + $0x20] sm:$0xf] %v879
        %v881 = vld [vmem:[%s851 + $0x24] sm:$0x1]
        %v882 = vsel %vm684, %v810, %v881
        %883 = vst [vmem:[%s851 + $0x24] sm:$0x1] %v882
        %v884 = vld [vmem:[%s851 + $0x28] sm:$0xf]
        %v885 = vsel %vm853, %v817, %v884
        %886 = vst [vmem:[%s851 + $0x28] sm:$0xf] %v885
        %v887 = vld [vmem:[%s851 + $0x2c] sm:$0x1]
        %v888 = vsel %vm684, %v818, %v887
        %889 = vst [vmem:[%s851 + $0x2c] sm:$0x1] %v888
        %v890 = vld [vmem:[%s851 + $0x30] sm:$0xf]
        %v891 = vsel %vm853, %v825, %v890
        %892 = vst [vmem:[%s851 + $0x30] sm:$0xf] %v891
        %v893 = vld [vmem:[%s851 + $0x34] sm:$0x1]
        %v894 = vsel %vm684, %v826, %v893
        %895 = vst [vmem:[%s851 + $0x34] sm:$0x1] %v894
        %v896 = vld [vmem:[%s851 + $0x38] sm:$0xf]
        %v897 = vsel %vm853, %v833, %v896
        %898 = vst [vmem:[%s851 + $0x38] sm:$0xf] %v897
        %v899 = vld [vmem:[%s851 + $0x3c] sm:$0x1]
        %v900 = vsel %vm684, %v834, %v899
        %901 = vst [vmem:[%s851 + $0x3c] sm:$0x1] %v900
        %v902 = vld [vmem:[#allocation2] sm:$0xf]
        %v903 = vld [vmem:[#allocation2 + $0x8] sm:$0xf]
        %v904 = vld [vmem:[#allocation2 + $0x10] sm:$0xf]
        %v905 = vld [vmem:[#allocation2 + $0x18] sm:$0xf]
        %v906 = vld [vmem:[#allocation2 + $0x20] sm:$0xf]
        %v907 = vld [vmem:[#allocation2 + $0x28] sm:$0xf]
        %v908 = vld [vmem:[#allocation2 + $0x30] sm:$0xf]
        %v909 = vld [vmem:[#allocation2 + $0x38] sm:$0xf]
        %v910 = vld [vmem:[#allocation2 + $0x4] sm:$0x1]
        %v911 = vld [vmem:[#allocation2 + $0xc] sm:$0x1]
        %v912 = vld [vmem:[#allocation2 + $0x14] sm:$0x1]
        %v913 = vld [vmem:[#allocation2 + $0x1c] sm:$0x1]
        %v914 = vld [vmem:[#allocation2 + $0x24] sm:$0x1]
        %v915 = vld [vmem:[#allocation2 + $0x2c] sm:$0x1]
        %v916 = vld [vmem:[#allocation2 + $0x34] sm:$0x1]
        %v917 = vld [vmem:[#allocation2 + $0x3c] sm:$0x1]
        %vm918 = vsmask.f32 3328
        %vm919 = vsmask.f32 7440
        %vm920 = vmor %vm918, %vm919
        %v922 = vshrl.u32 %v902, 16
        %v924 = vrot.slane %v922, 4
        %v925 = vshll.u32 %v902, 16
        %v927 = vrot.slane %v925, 5
        %v928 = vor.u32 %v924, %v927
        %v929 = vrot.slane %v928, 4
        %v931 = vshll.u32 %v910, 16
        %v933 = vrot.slane %v931, 5
        %v934 = vsel %vm920, %v929, %v933
        %v936 = vshrl.u32 %v903, 16
        %v938 = vrot.slane %v936, 4
        %v939 = vshll.u32 %v903, 16
        %v941 = vrot.slane %v939, 5
        %v942 = vor.u32 %v938, %v941
        %v943 = vrot.slane %v942, 4
        %v945 = vshll.u32 %v911, 16
        %v947 = vrot.slane %v945, 5
        %v948 = vsel %vm920, %v943, %v947
        %v950 = vshrl.u32 %v904, 16
        %v952 = vrot.slane %v950, 4
        %v953 = vshll.u32 %v904, 16
        %v955 = vrot.slane %v953, 5
        %v956 = vor.u32 %v952, %v955
        %v957 = vrot.slane %v956, 4
        %v959 = vshll.u32 %v912, 16
        %v961 = vrot.slane %v959, 5
        %v962 = vsel %vm920, %v957, %v961
        %v964 = vshrl.u32 %v905, 16
        %v966 = vrot.slane %v964, 4
        %v967 = vshll.u32 %v905, 16
        %v969 = vrot.slane %v967, 5
        %v970 = vor.u32 %v966, %v969
        %v971 = vrot.slane %v970, 4
        %v973 = vshll.u32 %v913, 16
        %v975 = vrot.slane %v973, 5
        %v976 = vsel %vm920, %v971, %v975
        %v978 = vshrl.u32 %v906, 16
        %v980 = vrot.slane %v978, 4
        %v981 = vshll.u32 %v906, 16
        %v983 = vrot.slane %v981, 5
        %v984 = vor.u32 %v980, %v983
        %v985 = vrot.slane %v984, 4
        %v987 = vshll.u32 %v914, 16
        %v989 = vrot.slane %v987, 5
        %v990 = vsel %vm920, %v985, %v989
        %v992 = vshrl.u32 %v907, 16
        %v994 = vrot.slane %v992, 4
        %v995 = vshll.u32 %v907, 16
        %v997 = vrot.slane %v995, 5
        %v998 = vor.u32 %v994, %v997
        %v999 = vrot.slane %v998, 4
        %v1001 = vshll.u32 %v915, 16
        %v1003 = vrot.slane %v1001, 5
        %v1004 = vsel %vm920, %v999, %v1003
        %v1006 = vshrl.u32 %v908, 16
        %v1008 = vrot.slane %v1006, 4
        %v1009 = vshll.u32 %v908, 16
        %v1011 = vrot.slane %v1009, 5
        %v1012 = vor.u32 %v1008, %v1011
        %v1013 = vrot.slane %v1012, 4
        %v1015 = vshll.u32 %v916, 16
        %v1017 = vrot.slane %v1015, 5
        %v1018 = vsel %vm920, %v1013, %v1017
        %v1020 = vshrl.u32 %v909, 16
        %v1022 = vrot.slane %v1020, 4
        %v1023 = vshll.u32 %v909, 16
        %v1025 = vrot.slane %v1023, 5
        %v1026 = vor.u32 %v1022, %v1025
        %v1027 = vrot.slane %v1026, 4
        %v1029 = vshll.u32 %v917, 16
        %v1031 = vrot.slane %v1029, 5
        %v1032 = vsel %vm920, %v1027, %v1031
        %v1033 = vld [vmem:[#allocation2] sm:$0xe]
        %v1034 = vld [vmem:[#allocation2 + $0x8] sm:$0xe]
        %v1035 = vld [vmem:[#allocation2 + $0x10] sm:$0xe]
        %v1036 = vld [vmem:[#allocation2 + $0x18] sm:$0xe]
        %v1037 = vld [vmem:[#allocation2 + $0x20] sm:$0xe]
        %v1038 = vld [vmem:[#allocation2 + $0x28] sm:$0xe]
        %v1039 = vld [vmem:[#allocation2 + $0x30] sm:$0xe]
        %v1040 = vld [vmem:[#allocation2 + $0x38] sm:$0xe]
        %vm1057 = vcmask 1042432
        %vm1058 = vcmask 1046532
        %vm1059 = vmor %vm1057, %vm1058
        %v1060 = vrot.slane %v1033, 5
        %v1061 = vrot.slane %v1060, 4
        %v1062 = vrot.slane %v910, 5
        %v1063 = vsel %vm1059, %v1061, %v1062
        %v1064 = vrot.slane %v1034, 5
        %v1065 = vrot.slane %v1064, 4
        %v1066 = vrot.slane %v911, 5
        %v1067 = vsel %vm1059, %v1065, %v1066
        %v1068 = vrot.slane %v1035, 5
        %v1069 = vrot.slane %v1068, 4
        %v1070 = vrot.slane %v912, 5
        %v1071 = vsel %vm1059, %v1069, %v1070
        %v1072 = vrot.slane %v1036, 5
        %v1073 = vrot.slane %v1072, 4
        %v1074 = vrot.slane %v913, 5
        %v1075 = vsel %vm1059, %v1073, %v1074
        %v1076 = vrot.slane %v1037, 5
        %v1077 = vrot.slane %v1076, 4
        %v1078 = vrot.slane %v914, 5
        %v1079 = vsel %vm1059, %v1077, %v1078
        %v1080 = vrot.slane %v1038, 5
        %v1081 = vrot.slane %v1080, 4
        %v1082 = vrot.slane %v915, 5
        %v1083 = vsel %vm1059, %v1081, %v1082
        %v1084 = vrot.slane %v1039, 5
        %v1085 = vrot.slane %v1084, 4
        %v1086 = vrot.slane %v916, 5
        %v1087 = vsel %vm1059, %v1085, %v1086
        %v1088 = vrot.slane %v1040, 5
        %v1089 = vrot.slane %v1088, 4
        %v1090 = vrot.slane %v917, 5
        %v1091 = vsel %vm1059, %v1089, %v1090
        %v1092 = vld [vmem:[%s851] sm:$0xf]
        %v1093 = vld [vmem:[%s851 + $0x8] sm:$0xf]
        %v1094 = vld [vmem:[%s851 + $0x10] sm:$0xf]
        %v1095 = vld [vmem:[%s851 + $0x18] sm:$0xf]
        %v1096 = vld [vmem:[%s851 + $0x20] sm:$0xf]
        %v1097 = vld [vmem:[%s851 + $0x28] sm:$0xf]
        %v1098 = vld [vmem:[%s851 + $0x30] sm:$0xf]
        %v1099 = vld [vmem:[%s851 + $0x38] sm:$0xf]
        %v1100 = vld [vmem:[%s851 + $0x4] sm:$0x1]
        %v1101 = vld [vmem:[%s851 + $0xc] sm:$0x1]
        %v1102 = vld [vmem:[%s851 + $0x14] sm:$0x1]
        %v1103 = vld [vmem:[%s851 + $0x1c] sm:$0x1]
        %v1104 = vld [vmem:[%s851 + $0x24] sm:$0x1]
        %v1105 = vld [vmem:[%s851 + $0x2c] sm:$0x1]
        %v1106 = vld [vmem:[%s851 + $0x34] sm:$0x1]
        %v1107 = vld [vmem:[%s851 + $0x3c] sm:$0x1]
        %v1109 = vshrl.u32 %v1092, 16
        %v1111 = vrot.slane %v1109, 4
        %v1112 = vshll.u32 %v1092, 16
        %v1114 = vrot.slane %v1112, 5
        %v1115 = vor.u32 %v1111, %v1114
        %v1116 = vrot.slane %v1115, 4
        %v1118 = vshll.u32 %v1100, 16
        %v1120 = vrot.slane %v1118, 5
        %v1121 = vsel %vm920, %v1116, %v1120
        %v1123 = vshrl.u32 %v1093, 16
        %v1125 = vrot.slane %v1123, 4
        %v1126 = vshll.u32 %v1093, 16
        %v1128 = vrot.slane %v1126, 5
        %v1129 = vor.u32 %v1125, %v1128
        %v1130 = vrot.slane %v1129, 4
        %v1132 = vshll.u32 %v1101, 16
        %v1134 = vrot.slane %v1132, 5
        %v1135 = vsel %vm920, %v1130, %v1134
        %v1137 = vshrl.u32 %v1094, 16
        %v1139 = vrot.slane %v1137, 4
        %v1140 = vshll.u32 %v1094, 16
        %v1142 = vrot.slane %v1140, 5
        %v1143 = vor.u32 %v1139, %v1142
        %v1144 = vrot.slane %v1143, 4
        %v1146 = vshll.u32 %v1102, 16
        %v1148 = vrot.slane %v1146, 5
        %v1149 = vsel %vm920, %v1144, %v1148
        %v1151 = vshrl.u32 %v1095, 16
        %v1153 = vrot.slane %v1151, 4
        %v1154 = vshll.u32 %v1095, 16
        %v1156 = vrot.slane %v1154, 5
        %v1157 = vor.u32 %v1153, %v1156
        %v1158 = vrot.slane %v1157, 4
        %v1160 = vshll.u32 %v1103, 16
        %v1162 = vrot.slane %v1160, 5
        %v1163 = vsel %vm920, %v1158, %v1162
        %v1165 = vshrl.u32 %v1096, 16
        %v1167 = vrot.slane %v1165, 4
        %v1168 = vshll.u32 %v1096, 16
        %v1170 = vrot.slane %v1168, 5
        %v1171 = vor.u32 %v1167, %v1170
        %v1172 = vrot.slane %v1171, 4
        %v1174 = vshll.u32 %v1104, 16
        %v1176 = vrot.slane %v1174, 5
        %v1177 = vsel %vm920, %v1172, %v1176
        %v1179 = vshrl.u32 %v1097, 16
        %v1181 = vrot.slane %v1179, 4
        %v1182 = vshll.u32 %v1097, 16
        %v1184 = vrot.slane %v1182, 5
        %v1185 = vor.u32 %v1181, %v1184
        %v1186 = vrot.slane %v1185, 4
        %v1188 = vshll.u32 %v1105, 16
        %v1190 = vrot.slane %v1188, 5
        %v1191 = vsel %vm920, %v1186, %v1190
        %v1193 = vshrl.u32 %v1098, 16
        %v1195 = vrot.slane %v1193, 4
        %v1196 = vshll.u32 %v1098, 16
        %v1198 = vrot.slane %v1196, 5
        %v1199 = vor.u32 %v1195, %v1198
        %v1200 = vrot.slane %v1199, 4
        %v1202 = vshll.u32 %v1106, 16
        %v1204 = vrot.slane %v1202, 5
        %v1205 = vsel %vm920, %v1200, %v1204
        %v1207 = vshrl.u32 %v1099, 16
        %v1209 = vrot.slane %v1207, 4
        %v1210 = vshll.u32 %v1099, 16
        %v1212 = vrot.slane %v1210, 5
        %v1213 = vor.u32 %v1209, %v1212
        %v1214 = vrot.slane %v1213, 4
        %v1216 = vshll.u32 %v1107, 16
        %v1218 = vrot.slane %v1216, 5
        %v1219 = vsel %vm920, %v1214, %v1218
        %v1220 = vld [vmem:[%s851] sm:$0xe]
        %v1221 = vld [vmem:[%s851 + $0x8] sm:$0xe]
        %v1222 = vld [vmem:[%s851 + $0x10] sm:$0xe]
        %v1223 = vld [vmem:[%s851 + $0x18] sm:$0xe]
        %v1224 = vld [vmem:[%s851 + $0x20] sm:$0xe]
        %v1225 = vld [vmem:[%s851 + $0x28] sm:$0xe]
        %v1226 = vld [vmem:[%s851 + $0x30] sm:$0xe]
        %v1227 = vld [vmem:[%s851 + $0x38] sm:$0xe]
        %v1244 = vrot.slane %v1220, 5
        %v1245 = vrot.slane %v1244, 4
        %v1246 = vrot.slane %v1100, 5
        %v1247 = vsel %vm1059, %v1245, %v1246
        %v1248 = vrot.slane %v1221, 5
        %v1249 = vrot.slane %v1248, 4
        %v1250 = vrot.slane %v1101, 5
        %v1251 = vsel %vm1059, %v1249, %v1250
        %v1252 = vrot.slane %v1222, 5
        %v1253 = vrot.slane %v1252, 4
        %v1254 = vrot.slane %v1102, 5
        %v1255 = vsel %vm1059, %v1253, %v1254
        %v1256 = vrot.slane %v1223, 5
        %v1257 = vrot.slane %v1256, 4
        %v1258 = vrot.slane %v1103, 5
        %v1259 = vsel %vm1059, %v1257, %v1258
        %v1260 = vrot.slane %v1224, 5
        %v1261 = vrot.slane %v1260, 4
        %v1262 = vrot.slane %v1104, 5
        %v1263 = vsel %vm1059, %v1261, %v1262
        %v1264 = vrot.slane %v1225, 5
        %v1265 = vrot.slane %v1264, 4
        %v1266 = vrot.slane %v1105, 5
        %v1267 = vsel %vm1059, %v1265, %v1266
        %v1268 = vrot.slane %v1226, 5
        %v1269 = vrot.slane %v1268, 4
        %v1270 = vrot.slane %v1106, 5
        %v1271 = vsel %vm1059, %v1269, %v1270
        %v1272 = vrot.slane %v1227, 5
        %v1273 = vrot.slane %v1272, 4
        %v1274 = vrot.slane %v1107, 5
        %v1275 = vsel %vm1059, %v1273, %v1274
        %s1276 = scalar_lea.vmem [#allocation2], 16
        %v1277 = vld [vmem:[%s1276] sm:$0xf]
        %v1278 = vld [vmem:[%s1276 + $0x8] sm:$0xf]
        %v1279 = vld [vmem:[%s1276 + $0x10] sm:$0xf]
        %v1280 = vld [vmem:[%s1276 + $0x18] sm:$0xf]
        %v1281 = vld [vmem:[%s1276 + $0x20] sm:$0xf]
        %v1282 = vld [vmem:[%s1276 + $0x28] sm:$0xf]
        %v1283 = vld [vmem:[%s1276 + $0x30] sm:$0xf]
        %v1284 = vld [vmem:[%s1276 + $0x38] sm:$0xf]
        %v1285 = vld [vmem:[%s1276 + $0x4] sm:$0x1]
        %v1286 = vld [vmem:[%s1276 + $0xc] sm:$0x1]
        %v1287 = vld [vmem:[%s1276 + $0x14] sm:$0x1]
        %v1288 = vld [vmem:[%s1276 + $0x1c] sm:$0x1]
        %v1289 = vld [vmem:[%s1276 + $0x24] sm:$0x1]
        %v1290 = vld [vmem:[%s1276 + $0x2c] sm:$0x1]
        %v1291 = vld [vmem:[%s1276 + $0x34] sm:$0x1]
        %v1292 = vld [vmem:[%s1276 + $0x3c] sm:$0x1]
        %v1294 = vshrl.u32 %v1277, 16
        %v1296 = vrot.slane %v1294, 4
        %v1297 = vshll.u32 %v1277, 16
        %v1299 = vrot.slane %v1297, 5
        %v1300 = vor.u32 %v1296, %v1299
        %v1301 = vrot.slane %v1300, 4
        %v1303 = vshll.u32 %v1285, 16
        %v1305 = vrot.slane %v1303, 5
        %v1306 = vsel %vm920, %v1301, %v1305
        %v1308 = vshrl.u32 %v1278, 16
        %v1310 = vrot.slane %v1308, 4
        %v1311 = vshll.u32 %v1278, 16
        %v1313 = vrot.slane %v1311, 5
        %v1314 = vor.u32 %v1310, %v1313
        %v1315 = vrot.slane %v1314, 4
        %v1317 = vshll.u32 %v1286, 16
        %v1319 = vrot.slane %v1317, 5
        %v1320 = vsel %vm920, %v1315, %v1319
        %v1322 = vshrl.u32 %v1279, 16
        %v1324 = vrot.slane %v1322, 4
        %v1325 = vshll.u32 %v1279, 16
        %v1327 = vrot.slane %v1325, 5
        %v1328 = vor.u32 %v1324, %v1327
        %v1329 = vrot.slane %v1328, 4
        %v1331 = vshll.u32 %v1287, 16
        %v1333 = vrot.slane %v1331, 5
        %v1334 = vsel %vm920, %v1329, %v1333
        %v1336 = vshrl.u32 %v1280, 16
        %v1338 = vrot.slane %v1336, 4
        %v1339 = vshll.u32 %v1280, 16
        %v1341 = vrot.slane %v1339, 5
        %v1342 = vor.u32 %v1338, %v1341
        %v1343 = vrot.slane %v1342, 4
        %v1345 = vshll.u32 %v1288, 16
        %v1347 = vrot.slane %v1345, 5
        %v1348 = vsel %vm920, %v1343, %v1347
        %v1350 = vshrl.u32 %v1281, 16
        %v1352 = vrot.slane %v1350, 4
        %v1353 = vshll.u32 %v1281, 16
        %v1355 = vrot.slane %v1353, 5
        %v1356 = vor.u32 %v1352, %v1355
        %v1357 = vrot.slane %v1356, 4
        %v1359 = vshll.u32 %v1289, 16
        %v1361 = vrot.slane %v1359, 5
        %v1362 = vsel %vm920, %v1357, %v1361
        %v1364 = vshrl.u32 %v1282, 16
        %v1366 = vrot.slane %v1364, 4
        %v1367 = vshll.u32 %v1282, 16
        %v1369 = vrot.slane %v1367, 5
        %v1370 = vor.u32 %v1366, %v1369
        %v1371 = vrot.slane %v1370, 4
        %v1373 = vshll.u32 %v1290, 16
        %v1375 = vrot.slane %v1373, 5
        %v1376 = vsel %vm920, %v1371, %v1375
        %v1378 = vshrl.u32 %v1283, 16
        %v1380 = vrot.slane %v1378, 4
        %v1381 = vshll.u32 %v1283, 16
        %v1383 = vrot.slane %v1381, 5
        %v1384 = vor.u32 %v1380, %v1383
        %v1385 = vrot.slane %v1384, 4
        %v1387 = vshll.u32 %v1291, 16
        %v1389 = vrot.slane %v1387, 5
        %v1390 = vsel %vm920, %v1385, %v1389
        %v1392 = vshrl.u32 %v1284, 16
        %v1394 = vrot.slane %v1392, 4
        %v1395 = vshll.u32 %v1284, 16
        %v1397 = vrot.slane %v1395, 5
        %v1398 = vor.u32 %v1394, %v1397
        %v1399 = vrot.slane %v1398, 4
        %v1401 = vshll.u32 %v1292, 16
        %v1403 = vrot.slane %v1401, 5
        %v1404 = vsel %vm920, %v1399, %v1403
        %v1405 = vld [vmem:[%s1276] sm:$0xe]
        %v1406 = vld [vmem:[%s1276 + $0x8] sm:$0xe]
        %v1407 = vld [vmem:[%s1276 + $0x10] sm:$0xe]
        %v1408 = vld [vmem:[%s1276 + $0x18] sm:$0xe]
        %v1409 = vld [vmem:[%s1276 + $0x20] sm:$0xe]
        %v1410 = vld [vmem:[%s1276 + $0x28] sm:$0xe]
        %v1411 = vld [vmem:[%s1276 + $0x30] sm:$0xe]
        %v1412 = vld [vmem:[%s1276 + $0x38] sm:$0xe]
        %v1429 = vrot.slane %v1405, 5
        %v1430 = vrot.slane %v1429, 4
        %v1431 = vrot.slane %v1285, 5
        %v1432 = vsel %vm1059, %v1430, %v1431
        %v1433 = vrot.slane %v1406, 5
        %v1434 = vrot.slane %v1433, 4
        %v1435 = vrot.slane %v1286, 5
        %v1436 = vsel %vm1059, %v1434, %v1435
        %v1437 = vrot.slane %v1407, 5
        %v1438 = vrot.slane %v1437, 4
        %v1439 = vrot.slane %v1287, 5
        %v1440 = vsel %vm1059, %v1438, %v1439
        %v1441 = vrot.slane %v1408, 5
        %v1442 = vrot.slane %v1441, 4
        %v1443 = vrot.slane %v1288, 5
        %v1444 = vsel %vm1059, %v1442, %v1443
        %v1445 = vrot.slane %v1409, 5
        %v1446 = vrot.slane %v1445, 4
        %v1447 = vrot.slane %v1289, 5
        %v1448 = vsel %vm1059, %v1446, %v1447
        %v1449 = vrot.slane %v1410, 5
        %v1450 = vrot.slane %v1449, 4
        %v1451 = vrot.slane %v1290, 5
        %v1452 = vsel %vm1059, %v1450, %v1451
        %v1453 = vrot.slane %v1411, 5
        %v1454 = vrot.slane %v1453, 4
        %v1455 = vrot.slane %v1291, 5
        %v1456 = vsel %vm1059, %v1454, %v1455
        %v1457 = vrot.slane %v1412, 5
        %v1458 = vrot.slane %v1457, 4
        %v1459 = vrot.slane %v1292, 5
        %v1460 = vsel %vm1059, %v1458, %v1459
        %v1469 = vunpack.c.l.b16 %v902
        %v1470 = vunpack.c.l.b16 %v903
        %v1471 = vunpack.c.l.b16 %v904
        %v1472 = vunpack.c.l.b16 %v905
        %v1473 = vunpack.c.l.b16 %v906
        %v1474 = vunpack.c.l.b16 %v907
        %v1475 = vunpack.c.l.b16 %v908
        %v1476 = vunpack.c.l.b16 %v909
        %v1477 = vpack.c.b16 %v1470, %v1469
        %v1478 = vpack.c.b16 %v1472, %v1471
        %v1479 = vpack.c.b16 %v1474, %v1473
        %v1480 = vpack.c.b16 %v1476, %v1475
        %v1485 = vunpack.c.l.b16 %v934
        %v1486 = vunpack.c.l.b16 %v948
        %v1487 = vunpack.c.l.b16 %v962
        %v1488 = vunpack.c.l.b16 %v976
        %v1489 = vunpack.c.l.b16 %v990
        %v1490 = vunpack.c.l.b16 %v1004
        %v1491 = vunpack.c.l.b16 %v1018
        %v1492 = vunpack.c.l.b16 %v1032
        %v1493 = vpack.c.b16 %v1486, %v1485
        %v1494 = vpack.c.b16 %v1488, %v1487
        %v1495 = vpack.c.b16 %v1490, %v1489
        %v1496 = vpack.c.b16 %v1492, %v1491
        %v1501 = vunpack.c.l.b16 %v1063
        %v1502 = vunpack.c.l.b16 %v1067
        %v1503 = vunpack.c.l.b16 %v1071
        %v1504 = vunpack.c.l.b16 %v1075
        %v1505 = vunpack.c.l.b16 %v1079
        %v1506 = vunpack.c.l.b16 %v1083
        %v1507 = vunpack.c.l.b16 %v1087
        %v1508 = vunpack.c.l.b16 %v1091
        %v1509 = vpack.c.b16 %v1502, %v1501
        %v1510 = vpack.c.b16 %v1504, %v1503
        %v1511 = vpack.c.b16 %v1506, %v1505
        %v1512 = vpack.c.b16 %v1508, %v1507
        %v1525 = vunpack.c.l.b16 %v1092
        %v1526 = vunpack.c.l.b16 %v1093
        %v1527 = vunpack.c.l.b16 %v1094
        %v1528 = vunpack.c.l.b16 %v1095
        %v1529 = vunpack.c.l.b16 %v1096
        %v1530 = vunpack.c.l.b16 %v1097
        %v1531 = vunpack.c.l.b16 %v1098
        %v1532 = vunpack.c.l.b16 %v1099
        %v1533 = vpack.c.b16 %v1526, %v1525
        %v1534 = vpack.c.b16 %v1528, %v1527
        %v1535 = vpack.c.b16 %v1530, %v1529
        %v1536 = vpack.c.b16 %v1532, %v1531
        %v1541 = vunpack.c.l.b16 %v1121
        %v1542 = vunpack.c.l.b16 %v1135
        %v1543 = vunpack.c.l.b16 %v1149
        %v1544 = vunpack.c.l.b16 %v1163
        %v1545 = vunpack.c.l.b16 %v1177
        %v1546 = vunpack.c.l.b16 %v1191
        %v1547 = vunpack.c.l.b16 %v1205
        %v1548 = vunpack.c.l.b16 %v1219
        %v1549 = vpack.c.b16 %v1542, %v1541
        %v1550 = vpack.c.b16 %v1544, %v1543
        %v1551 = vpack.c.b16 %v1546, %v1545
        %v1552 = vpack.c.b16 %v1548, %v1547
        %v1557 = vunpack.c.l.b16 %v1247
        %v1558 = vunpack.c.l.b16 %v1251
        %v1559 = vunpack.c.l.b16 %v1255
        %v1560 = vunpack.c.l.b16 %v1259
        %v1561 = vunpack.c.l.b16 %v1263
        %v1562 = vunpack.c.l.b16 %v1267
        %v1563 = vunpack.c.l.b16 %v1271
        %v1564 = vunpack.c.l.b16 %v1275
        %v1565 = vpack.c.b16 %v1558, %v1557
        %v1566 = vpack.c.b16 %v1560, %v1559
        %v1567 = vpack.c.b16 %v1562, %v1561
        %v1568 = vpack.c.b16 %v1564, %v1563
        %v1581 = vunpack.c.l.b16 %v1277
        %v1582 = vunpack.c.l.b16 %v1278
        %v1583 = vunpack.c.l.b16 %v1279
        %v1584 = vunpack.c.l.b16 %v1280
        %v1585 = vunpack.c.l.b16 %v1281
        %v1586 = vunpack.c.l.b16 %v1282
        %v1587 = vunpack.c.l.b16 %v1283
        %v1588 = vunpack.c.l.b16 %v1284
        %v1589 = vpack.c.b16 %v1582, %v1581
        %v1590 = vpack.c.b16 %v1584, %v1583
        %v1591 = vpack.c.b16 %v1586, %v1585
        %v1592 = vpack.c.b16 %v1588, %v1587
        %v1597 = vunpack.c.l.b16 %v1306
        %v1598 = vunpack.c.l.b16 %v1320
        %v1599 = vunpack.c.l.b16 %v1334
        %v1600 = vunpack.c.l.b16 %v1348
        %v1601 = vunpack.c.l.b16 %v1362
        %v1602 = vunpack.c.l.b16 %v1376
        %v1603 = vunpack.c.l.b16 %v1390
        %v1604 = vunpack.c.l.b16 %v1404
        %v1605 = vpack.c.b16 %v1598, %v1597
        %v1606 = vpack.c.b16 %v1600, %v1599
        %v1607 = vpack.c.b16 %v1602, %v1601
        %v1608 = vpack.c.b16 %v1604, %v1603
        %v1613 = vunpack.c.l.b16 %v1432
        %v1614 = vunpack.c.l.b16 %v1436
        %v1615 = vunpack.c.l.b16 %v1440
        %v1616 = vunpack.c.l.b16 %v1444
        %v1617 = vunpack.c.l.b16 %v1448
        %v1618 = vunpack.c.l.b16 %v1452
        %v1619 = vunpack.c.l.b16 %v1456
        %v1620 = vunpack.c.l.b16 %v1460
        %v1621 = vpack.c.b16 %v1614, %v1613
        %v1622 = vpack.c.b16 %v1616, %v1615
        %v1623 = vpack.c.b16 %v1618, %v1617
        %v1624 = vpack.c.b16 %v1620, %v1619
        %v1629 = vld [vmem:[#allocation11] sm:$0xf]
        %v1630 = vld [vmem:[#allocation11 + $0x4] sm:$0xf]
        %v1631 = vld [vmem:[#allocation11 + $0x8] sm:$0xf]
        %v1632 = vld [vmem:[#allocation11 + $0xc] sm:$0xf]
        %v1633 = vld [vmem:[#allocation11 + $0x10] sm:$0xf]
        %v1634 = vld [vmem:[#allocation11 + $0x14] sm:$0xf]
        %v1635 = vld [vmem:[#allocation11 + $0x18] sm:$0xf]
        %v1636 = vld [vmem:[#allocation11 + $0x1c] sm:$0xf]
        %v1637 = vld [vmem:[#allocation11 + $0x20] sm:$0xf]
        %v1638 = vld [vmem:[#allocation11 + $0x24] sm:$0xf]
        %v1639 = vld [vmem:[#allocation11 + $0x28] sm:$0xf]
        %v1640 = vld [vmem:[#allocation11 + $0x2c] sm:$0xf]
        %v1641 = vld [vmem:[#allocation11 + $0x30] sm:$0xf]
        %v1642 = vld [vmem:[#allocation11 + $0x34] sm:$0xf]
        %v1643 = vld [vmem:[#allocation11 + $0x38] sm:$0xf]
        %v1644 = vld [vmem:[#allocation11 + $0x3c] sm:$0xf]
        %v1645 = vld [vmem:[#allocation11 + $0x40] sm:$0xf]
        %v1646 = vld [vmem:[#allocation11 + $0x44] sm:$0xf]
        %v1647 = vld [vmem:[#allocation11 + $0x48] sm:$0xf]
        %v1648 = vld [vmem:[#allocation11 + $0x4c] sm:$0xf]
        %v1649 = vld [vmem:[#allocation11 + $0x50] sm:$0xf]
        %v1650 = vld [vmem:[#allocation11 + $0x54] sm:$0xf]
        %v1651 = vld [vmem:[#allocation11 + $0x58] sm:$0xf]
        %v1652 = vld [vmem:[#allocation11 + $0x5c] sm:$0xf]
        %v1653 = vld [vmem:[#allocation11 + $0x60] sm:$0xf]
        %v1654 = vld [vmem:[#allocation11 + $0x64] sm:$0xf]
        %v1655 = vld [vmem:[#allocation11 + $0x68] sm:$0xf]
        %v1656 = vld [vmem:[#allocation11 + $0x6c] sm:$0xf]
        %v1657 = vld [vmem:[#allocation11 + $0x70] sm:$0xf]
        %v1658 = vld [vmem:[#allocation11 + $0x74] sm:$0xf]
        %v1659 = vld [vmem:[#allocation11 + $0x78] sm:$0xf]
        %v1660 = vld [vmem:[#allocation11 + $0x7c] sm:$0xf]
        %v1661 = vld [vmem:[#allocation11 + $0x80] sm:$0xf]
        %v1662 = vld [vmem:[#allocation11 + $0x84] sm:$0xf]
        %v1663 = vld [vmem:[#allocation11 + $0x88] sm:$0xf]
        %v1664 = vld [vmem:[#allocation11 + $0x8c] sm:$0xf]
        %v1665 = vld [vmem:[#allocation11 + $0x90] sm:$0xf]
        %v1666 = vld [vmem:[#allocation11 + $0x94] sm:$0xf]
        %v1667 = vld [vmem:[#allocation11 + $0x98] sm:$0xf]
        %v1668 = vld [vmem:[#allocation11 + $0x9c] sm:$0xf]
        %v1669 = vld [vmem:[#allocation11 + $0xa0] sm:$0xf]
        %v1670 = vld [vmem:[#allocation11 + $0xa4] sm:$0xf]
        %v1671 = vld [vmem:[#allocation11 + $0xa8] sm:$0xf]
        %v1672 = vld [vmem:[#allocation11 + $0xac] sm:$0xf]
        %v1673 = vld [vmem:[#allocation11 + $0xb0] sm:$0xf]
        %v1674 = vld [vmem:[#allocation11 + $0xb4] sm:$0xf]
        %v1675 = vld [vmem:[#allocation11 + $0xb8] sm:$0xf]
        %v1676 = vld [vmem:[#allocation11 + $0xbc] sm:$0xf]
        %v1677 = vld [vmem:[#allocation11 + $0xc0] sm:$0xf]
        %v1678 = vld [vmem:[#allocation11 + $0xc4] sm:$0xf]
        %v1679 = vld [vmem:[#allocation11 + $0xc8] sm:$0xf]
        %v1680 = vld [vmem:[#allocation11 + $0xcc] sm:$0xf]
        %v1681 = vld [vmem:[#allocation11 + $0xd0] sm:$0xf]
        %v1682 = vld [vmem:[#allocation11 + $0xd4] sm:$0xf]
        %v1683 = vld [vmem:[#allocation11 + $0xd8] sm:$0xf]
        %v1684 = vld [vmem:[#allocation11 + $0xdc] sm:$0xf]
        %v1685 = vld [vmem:[#allocation11 + $0xe0] sm:$0xf]
        %v1686 = vld [vmem:[#allocation11 + $0xe4] sm:$0xf]
        %v1687 = vld [vmem:[#allocation11 + $0xe8] sm:$0xf]
        %v1688 = vld [vmem:[#allocation11 + $0xec] sm:$0xf]
        %v1689 = vld [vmem:[#allocation11 + $0xf0] sm:$0xf]
        %v1690 = vld [vmem:[#allocation11 + $0xf4] sm:$0xf]
        %v1691 = vld [vmem:[#allocation11 + $0xf8] sm:$0xf]
        %v1692 = vld [vmem:[#allocation11 + $0xfc] sm:$0xf]
        %v1693 = vld [vmem:[#allocation11 + $0x100] sm:$0xf]
        %v1694 = vld [vmem:[#allocation11 + $0x104] sm:$0xf]
        %v1695 = vld [vmem:[#allocation11 + $0x108] sm:$0xf]
        %v1696 = vld [vmem:[#allocation11 + $0x10c] sm:$0xf]
        %v1697 = vld [vmem:[#allocation11 + $0x110] sm:$0xf]
        %v1698 = vld [vmem:[#allocation11 + $0x114] sm:$0xf]
        %v1699 = vld [vmem:[#allocation11 + $0x118] sm:$0xf]
        %v1700 = vld [vmem:[#allocation11 + $0x11c] sm:$0xf]
        %v1701 = vld [vmem:[#allocation11 + $0x120] sm:$0xf]
        %v1702 = vld [vmem:[#allocation11 + $0x124] sm:$0xf]
        %v1703 = vld [vmem:[#allocation11 + $0x128] sm:$0xf]
        %v1704 = vld [vmem:[#allocation11 + $0x12c] sm:$0xf]
        %v1705 = vld [vmem:[#allocation11 + $0x130] sm:$0xf]
        %v1706 = vld [vmem:[#allocation11 + $0x134] sm:$0xf]
        %v1707 = vld [vmem:[#allocation11 + $0x138] sm:$0xf]
        %v1708 = vld [vmem:[#allocation11 + $0x13c] sm:$0xf]
        %v1709 = vld [vmem:[#allocation11 + $0x140] sm:$0xf]
        %v1710 = vld [vmem:[#allocation11 + $0x144] sm:$0xf]
        %v1711 = vld [vmem:[#allocation11 + $0x148] sm:$0xf]
        %v1712 = vld [vmem:[#allocation11 + $0x14c] sm:$0xf]
        %v1713 = vld [vmem:[#allocation11 + $0x150] sm:$0xf]
        %v1714 = vld [vmem:[#allocation11 + $0x154] sm:$0xf]
        %v1715 = vld [vmem:[#allocation11 + $0x158] sm:$0xf]
        %v1716 = vld [vmem:[#allocation11 + $0x15c] sm:$0xf]
        %v1717 = vld [vmem:[#allocation11 + $0x160] sm:$0xf]
        %v1718 = vld [vmem:[#allocation11 + $0x164] sm:$0xf]
        %v1719 = vld [vmem:[#allocation11 + $0x168] sm:$0xf]
        %v1720 = vld [vmem:[#allocation11 + $0x16c] sm:$0xf]
        %v1721 = vld [vmem:[#allocation11 + $0x170] sm:$0xf]
        %v1722 = vld [vmem:[#allocation11 + $0x174] sm:$0xf]
        %v1723 = vld [vmem:[#allocation11 + $0x178] sm:$0xf]
        %v1724 = vld [vmem:[#allocation11 + $0x17c] sm:$0xf]
        %v1725 = vld [vmem:[#allocation11 + $0x180] sm:$0xf]
        %v1726 = vld [vmem:[#allocation11 + $0x184] sm:$0xf]
        %v1727 = vld [vmem:[#allocation11 + $0x188] sm:$0xf]
        %v1728 = vld [vmem:[#allocation11 + $0x18c] sm:$0xf]
        %v1729 = vld [vmem:[#allocation11 + $0x190] sm:$0xf]
        %v1730 = vld [vmem:[#allocation11 + $0x194] sm:$0xf]
        %v1731 = vld [vmem:[#allocation11 + $0x198] sm:$0xf]
        %v1732 = vld [vmem:[#allocation11 + $0x19c] sm:$0xf]
        %v1733 = vld [vmem:[#allocation11 + $0x1a0] sm:$0xf]
        %v1734 = vld [vmem:[#allocation11 + $0x1a4] sm:$0xf]
        %v1735 = vld [vmem:[#allocation11 + $0x1a8] sm:$0xf]
        %v1736 = vld [vmem:[#allocation11 + $0x1ac] sm:$0xf]
        %v1737 = vld [vmem:[#allocation11 + $0x1b0] sm:$0xf]
        %v1738 = vld [vmem:[#allocation11 + $0x1b4] sm:$0xf]
        %v1739 = vld [vmem:[#allocation11 + $0x1b8] sm:$0xf]
        %v1740 = vld [vmem:[#allocation11 + $0x1bc] sm:$0xf]
        %v1741 = vld [vmem:[#allocation11 + $0x1c0] sm:$0xf]
        %v1742 = vld [vmem:[#allocation11 + $0x1c4] sm:$0xf]
        %v1743 = vld [vmem:[#allocation11 + $0x1c8] sm:$0xf]
        %v1744 = vld [vmem:[#allocation11 + $0x1cc] sm:$0xf]
        %v1745 = vld [vmem:[#allocation11 + $0x1d0] sm:$0xf]
        %v1746 = vld [vmem:[#allocation11 + $0x1d4] sm:$0xf]
        %v1747 = vld [vmem:[#allocation11 + $0x1d8] sm:$0xf]
        %v1748 = vld [vmem:[#allocation11 + $0x1dc] sm:$0xf]
        %v1749 = vld [vmem:[#allocation11 + $0x1e0] sm:$0xf]
        %v1750 = vld [vmem:[#allocation11 + $0x1e4] sm:$0xf]
        %v1751 = vld [vmem:[#allocation11 + $0x1e8] sm:$0xf]
        %v1752 = vld [vmem:[#allocation11 + $0x1ec] sm:$0xf]
        %v1753 = vld [vmem:[#allocation11 + $0x1f0] sm:$0xf]
        %v1754 = vld [vmem:[#allocation11 + $0x1f4] sm:$0xf]
        %v1755 = vld [vmem:[#allocation11 + $0x1f8] sm:$0xf]
        %v1756 = vld [vmem:[#allocation11 + $0x1fc] sm:$0xf]
        %v1757 = vld [vmem:[#allocation11 + $0x200] sm:$0xf]
        %v1758 = vld [vmem:[#allocation11 + $0x204] sm:$0xf]
        %v1759 = vld [vmem:[#allocation11 + $0x208] sm:$0xf]
        %v1760 = vld [vmem:[#allocation11 + $0x20c] sm:$0xf]
        %v1761 = vld [vmem:[#allocation11 + $0x210] sm:$0xf]
        %v1762 = vld [vmem:[#allocation11 + $0x214] sm:$0xf]
        %v1763 = vld [vmem:[#allocation11 + $0x218] sm:$0xf]
        %v1764 = vld [vmem:[#allocation11 + $0x21c] sm:$0xf]
        %v1765 = vld [vmem:[#allocation11 + $0x220] sm:$0xf]
        %v1766 = vld [vmem:[#allocation11 + $0x224] sm:$0xf]
        %v1767 = vld [vmem:[#allocation11 + $0x228] sm:$0xf]
        %v1768 = vld [vmem:[#allocation11 + $0x22c] sm:$0xf]
        %v1769 = vld [vmem:[#allocation11 + $0x230] sm:$0xf]
        %v1770 = vld [vmem:[#allocation11 + $0x234] sm:$0xf]
        %v1771 = vld [vmem:[#allocation11 + $0x238] sm:$0xf]
        %v1772 = vld [vmem:[#allocation11 + $0x23c] sm:$0xf]
        %v1917 = vunpack.c.l.b16 %v1629
        %v1918 = vunpack.c.l.b16 %v1630
        %v1919 = vunpack.c.l.b16 %v1631
        %v1920 = vunpack.c.l.b16 %v1632
        %v1921 = vunpack.c.l.b16 %v1633
        %v1922 = vunpack.c.l.b16 %v1634
        %v1923 = vunpack.c.l.b16 %v1635
        %v1924 = vunpack.c.l.b16 %v1636
        %v1925 = vunpack.c.l.b16 %v1637
        %v1926 = vunpack.c.l.b16 %v1638
        %v1927 = vunpack.c.l.b16 %v1639
        %v1928 = vunpack.c.l.b16 %v1640
        %v1929 = vunpack.c.l.b16 %v1641
        %v1930 = vunpack.c.l.b16 %v1642
        %v1931 = vunpack.c.l.b16 %v1643
        %v1932 = vunpack.c.l.b16 %v1644
        %v1933 = vunpack.c.l.b16 %v1645
        %v1934 = vunpack.c.l.b16 %v1646
        %v1935 = vunpack.c.l.b16 %v1647
        %v1936 = vunpack.c.l.b16 %v1648
        %v1937 = vunpack.c.l.b16 %v1649
        %v1938 = vunpack.c.l.b16 %v1650
        %v1939 = vunpack.c.l.b16 %v1651
        %v1940 = vunpack.c.l.b16 %v1652
        %v1941 = vunpack.c.l.b16 %v1653
        %v1942 = vunpack.c.l.b16 %v1654
        %v1943 = vunpack.c.l.b16 %v1655
        %v1944 = vunpack.c.l.b16 %v1656
        %v1945 = vunpack.c.l.b16 %v1657
        %v1946 = vunpack.c.l.b16 %v1658
        %v1947 = vunpack.c.l.b16 %v1659
        %v1948 = vunpack.c.l.b16 %v1660
        %v1949 = vunpack.c.l.b16 %v1661
        %v1950 = vunpack.c.l.b16 %v1662
        %v1951 = vunpack.c.l.b16 %v1663
        %v1952 = vunpack.c.l.b16 %v1664
        %v1953 = vunpack.c.l.b16 %v1665
        %v1954 = vunpack.c.l.b16 %v1666
        %v1955 = vunpack.c.l.b16 %v1667
        %v1956 = vunpack.c.l.b16 %v1668
        %v1957 = vunpack.c.l.b16 %v1669
        %v1958 = vunpack.c.l.b16 %v1670
        %v1959 = vunpack.c.l.b16 %v1671
        %v1960 = vunpack.c.l.b16 %v1672
        %v1961 = vunpack.c.l.b16 %v1673
        %v1962 = vunpack.c.l.b16 %v1674
        %v1963 = vunpack.c.l.b16 %v1675
        %v1964 = vunpack.c.l.b16 %v1676
        %v1965 = vunpack.c.l.b16 %v1677
        %v1966 = vunpack.c.l.b16 %v1678
        %v1967 = vunpack.c.l.b16 %v1679
        %v1968 = vunpack.c.l.b16 %v1680
        %v1969 = vunpack.c.l.b16 %v1681
        %v1970 = vunpack.c.l.b16 %v1682
        %v1971 = vunpack.c.l.b16 %v1683
        %v1972 = vunpack.c.l.b16 %v1684
        %v1973 = vunpack.c.l.b16 %v1685
        %v1974 = vunpack.c.l.b16 %v1686
        %v1975 = vunpack.c.l.b16 %v1687
        %v1976 = vunpack.c.l.b16 %v1688
        %v1977 = vunpack.c.l.b16 %v1689
        %v1978 = vunpack.c.l.b16 %v1690
        %v1979 = vunpack.c.l.b16 %v1691
        %v1980 = vunpack.c.l.b16 %v1692
        %v1981 = vunpack.c.l.b16 %v1693
        %v1982 = vunpack.c.l.b16 %v1694
        %v1983 = vunpack.c.l.b16 %v1695
        %v1984 = vunpack.c.l.b16 %v1696
        %v1985 = vunpack.c.l.b16 %v1697
        %v1986 = vunpack.c.l.b16 %v1698
        %v1987 = vunpack.c.l.b16 %v1699
        %v1988 = vunpack.c.l.b16 %v1700
        %v1989 = vunpack.c.l.b16 %v1701
        %v1990 = vunpack.c.l.b16 %v1702
        %v1991 = vunpack.c.l.b16 %v1703
        %v1992 = vunpack.c.l.b16 %v1704
        %v1993 = vunpack.c.l.b16 %v1705
        %v1994 = vunpack.c.l.b16 %v1706
        %v1995 = vunpack.c.l.b16 %v1707
        %v1996 = vunpack.c.l.b16 %v1708
        %v1997 = vunpack.c.l.b16 %v1709
        %v1998 = vunpack.c.l.b16 %v1710
        %v1999 = vunpack.c.l.b16 %v1711
        %v2000 = vunpack.c.l.b16 %v1712
        %v2001 = vunpack.c.l.b16 %v1713
        %v2002 = vunpack.c.l.b16 %v1714
        %v2003 = vunpack.c.l.b16 %v1715
        %v2004 = vunpack.c.l.b16 %v1716
        %v2005 = vunpack.c.l.b16 %v1717
        %v2006 = vunpack.c.l.b16 %v1718
        %v2007 = vunpack.c.l.b16 %v1719
        %v2008 = vunpack.c.l.b16 %v1720
        %v2009 = vunpack.c.l.b16 %v1721
        %v2010 = vunpack.c.l.b16 %v1722
        %v2011 = vunpack.c.l.b16 %v1723
        %v2012 = vunpack.c.l.b16 %v1724
        %v2013 = vunpack.c.l.b16 %v1725
        %v2014 = vunpack.c.l.b16 %v1726
        %v2015 = vunpack.c.l.b16 %v1727
        %v2016 = vunpack.c.l.b16 %v1728
        %v2017 = vunpack.c.l.b16 %v1729
        %v2018 = vunpack.c.l.b16 %v1730
        %v2019 = vunpack.c.l.b16 %v1731
        %v2020 = vunpack.c.l.b16 %v1732
        %v2021 = vunpack.c.l.b16 %v1733
        %v2022 = vunpack.c.l.b16 %v1734
        %v2023 = vunpack.c.l.b16 %v1735
        %v2024 = vunpack.c.l.b16 %v1736
        %v2025 = vunpack.c.l.b16 %v1737
        %v2026 = vunpack.c.l.b16 %v1738
        %v2027 = vunpack.c.l.b16 %v1739
        %v2028 = vunpack.c.l.b16 %v1740
        %v2029 = vunpack.c.l.b16 %v1741
        %v2030 = vunpack.c.l.b16 %v1742
        %v2031 = vunpack.c.l.b16 %v1743
        %v2032 = vunpack.c.l.b16 %v1744
        %v2033 = vunpack.c.l.b16 %v1745
        %v2034 = vunpack.c.l.b16 %v1746
        %v2035 = vunpack.c.l.b16 %v1747
        %v2036 = vunpack.c.l.b16 %v1748
        %v2037 = vunpack.c.l.b16 %v1749
        %v2038 = vunpack.c.l.b16 %v1750
        %v2039 = vunpack.c.l.b16 %v1751
        %v2040 = vunpack.c.l.b16 %v1752
        %v2041 = vunpack.c.l.b16 %v1753
        %v2042 = vunpack.c.l.b16 %v1754
        %v2043 = vunpack.c.l.b16 %v1755
        %v2044 = vunpack.c.l.b16 %v1756
        %v2045 = vunpack.c.l.b16 %v1757
        %v2046 = vunpack.c.l.b16 %v1758
        %v2047 = vunpack.c.l.b16 %v1759
        %v2048 = vunpack.c.l.b16 %v1760
        %v2049 = vunpack.c.l.b16 %v1761
        %v2050 = vunpack.c.l.b16 %v1762
        %v2051 = vunpack.c.l.b16 %v1763
        %v2052 = vunpack.c.l.b16 %v1764
        %v2053 = vunpack.c.l.b16 %v1765
        %v2054 = vunpack.c.l.b16 %v1766
        %v2055 = vunpack.c.l.b16 %v1767
        %v2056 = vunpack.c.l.b16 %v1768
        %v2057 = vunpack.c.l.b16 %v1769
        %v2058 = vunpack.c.l.b16 %v1770
        %v2059 = vunpack.c.l.b16 %v1771
        %v2060 = vunpack.c.l.b16 %v1772
        %v2061 = vpack.c.b16 %v1918, %v1917
        %v2062 = vpack.c.b16 %v1920, %v1919
        %v2063 = vpack.c.b16 %v1922, %v1921
        %v2064 = vpack.c.b16 %v1924, %v1923
        %v2065 = vpack.c.b16 %v1926, %v1925
        %v2066 = vpack.c.b16 %v1928, %v1927
        %v2067 = vpack.c.b16 %v1930, %v1929
        %v2068 = vpack.c.b16 %v1932, %v1931
        %v2069 = vpack.c.b16 %v1934, %v1933
        %v2070 = vpack.c.b16 %v1936, %v1935
        %v2071 = vpack.c.b16 %v1938, %v1937
        %v2072 = vpack.c.b16 %v1940, %v1939
        %v2073 = vpack.c.b16 %v1942, %v1941
        %v2074 = vpack.c.b16 %v1944, %v1943
        %v2075 = vpack.c.b16 %v1946, %v1945
        %v2076 = vpack.c.b16 %v1948, %v1947
        %v2077 = vpack.c.b16 %v1950, %v1949
        %v2078 = vpack.c.b16 %v1952, %v1951
        %v2079 = vpack.c.b16 %v1954, %v1953
        %v2080 = vpack.c.b16 %v1956, %v1955
        %v2081 = vpack.c.b16 %v1958, %v1957
        %v2082 = vpack.c.b16 %v1960, %v1959
        %v2083 = vpack.c.b16 %v1962, %v1961
        %v2084 = vpack.c.b16 %v1964, %v1963
        %v2085 = vpack.c.b16 %v1966, %v1965
        %v2086 = vpack.c.b16 %v1968, %v1967
        %v2087 = vpack.c.b16 %v1970, %v1969
        %v2088 = vpack.c.b16 %v1972, %v1971
        %v2089 = vpack.c.b16 %v1974, %v1973
        %v2090 = vpack.c.b16 %v1976, %v1975
        %v2091 = vpack.c.b16 %v1978, %v1977
        %v2092 = vpack.c.b16 %v1980, %v1979
        %v2093 = vpack.c.b16 %v1982, %v1981
        %v2094 = vpack.c.b16 %v1984, %v1983
        %v2095 = vpack.c.b16 %v1986, %v1985
        %v2096 = vpack.c.b16 %v1988, %v1987
        %v2097 = vpack.c.b16 %v1990, %v1989
        %v2098 = vpack.c.b16 %v1992, %v1991
        %v2099 = vpack.c.b16 %v1994, %v1993
        %v2100 = vpack.c.b16 %v1996, %v1995
        %v2101 = vpack.c.b16 %v1998, %v1997
        %v2102 = vpack.c.b16 %v2000, %v1999
        %v2103 = vpack.c.b16 %v2002, %v2001
        %v2104 = vpack.c.b16 %v2004, %v2003
        %v2105 = vpack.c.b16 %v2006, %v2005
        %v2106 = vpack.c.b16 %v2008, %v2007
        %v2107 = vpack.c.b16 %v2010, %v2009
        %v2108 = vpack.c.b16 %v2012, %v2011
        %v2109 = vpack.c.b16 %v2014, %v2013
        %v2110 = vpack.c.b16 %v2016, %v2015
        %v2111 = vpack.c.b16 %v2018, %v2017
        %v2112 = vpack.c.b16 %v2020, %v2019
        %v2113 = vpack.c.b16 %v2022, %v2021
        %v2114 = vpack.c.b16 %v2024, %v2023
        %v2115 = vpack.c.b16 %v2026, %v2025
        %v2116 = vpack.c.b16 %v2028, %v2027
        %v2117 = vpack.c.b16 %v2030, %v2029
        %v2118 = vpack.c.b16 %v2032, %v2031
        %v2119 = vpack.c.b16 %v2034, %v2033
        %v2120 = vpack.c.b16 %v2036, %v2035
        %v2121 = vpack.c.b16 %v2038, %v2037
        %v2122 = vpack.c.b16 %v2040, %v2039
        %v2123 = vpack.c.b16 %v2042, %v2041
        %v2124 = vpack.c.b16 %v2044, %v2043
        %v2125 = vpack.c.b16 %v2046, %v2045
        %v2126 = vpack.c.b16 %v2048, %v2047
        %v2127 = vpack.c.b16 %v2050, %v2049
        %v2128 = vpack.c.b16 %v2052, %v2051
        %v2129 = vpack.c.b16 %v2054, %v2053
        %v2130 = vpack.c.b16 %v2056, %v2055
        %v2131 = vpack.c.b16 %v2058, %v2057
        %v2132 = vpack.c.b16 %v2060, %v2059
        %2205 = vmatprep.subr.bf16.mxu0 0
        %2206 = vmatpush1.bf16.msra.mxu0 %v2061
        %2207 = vmatprep.subr.bf16.mxu0 0
        %2208 = vmatpush1.bf16.msra.mxu0 %v2062
        %2209 = vmatprep.subr.bf16.mxu0 0
        %2210 = vmatpush1.bf16.msra.mxu0 %v2063
        %2211 = vmatprep.subr.bf16.mxu0 0
        %2212 = vmatpush1.bf16.msra.mxu0 %v2064
        %2213 = vmatprep.subr.bf16.mxu0 0
        %2214 = vmatpush1.bf16.msra.mxu0 %v2065
        %2215 = vmatprep.subr.bf16.mxu0 0
        %2216 = vmatpush1.bf16.msra.mxu0 %v2066
        %2217 = vmatprep.subr.bf16.mxu0 0
        %2218 = vmatpush1.bf16.msra.mxu0 %v2067
        %2219 = vmatprep.subr.bf16.mxu0 0
        %2220 = vmatpush1.bf16.msra.mxu0 %v2068
        %2221 = vmatprep.subr.bf16.mxu0 0
        %2222 = vmatpush1.bf16.msra.mxu0 %v2069
        %2223 = vmatprep.subr.bf16.mxu0 0
        %2224 = vmatpush1.bf16.msra.mxu0 %v2070
        %2225 = vmatprep.subr.bf16.mxu0 0
        %2226 = vmatpush1.bf16.msra.mxu0 %v2071
        %2227 = vmatprep.subr.bf16.mxu0 0
        %2228 = vmatpush1.bf16.msra.mxu0 %v2072
        %2229 = vmatprep.subr.bf16.mxu0 0
        %2230 = vmatpush1.bf16.msra.mxu0 %v2073
        %2231 = vmatprep.subr.bf16.mxu0 0
        %2232 = vmatpush1.bf16.msra.mxu0 %v2074
        %2233 = vmatprep.subr.bf16.mxu0 0
        %2234 = vmatpush1.bf16.msra.mxu0 %v2075
        %2235 = vmatprep.subr.bf16.mxu0 0
        %2236 = vmatpush1.bf16.msra.mxu0 %v2076
        %2237 = vmatprep.mubr.bf16.mxu0 %v1493
        %2238 = vmatmul.mubr.bf16.gmra.mrb[0].mxu0 %v1477
        %v2239 = vpop.f32.mrb[0].mxu0
        %v2240 = vadd.f32 0.0, %v2239
        %v2241 = vpop.f32.mrb[0].mxu0
        %v2242 = vpop.f32.mrb[0].mxu0
        %v2243 = vadd.f32 0.0, %v2242
        %v2244 = vpop.f32.mrb[0].mxu0
        %2245 = vmatprep.mubr.bf16.mxu0 %v1494
        %2246 = vmatmul.mubr.bf16.gmra.mrb[0].mxu0 %v1478
        %v2247 = vpop.f32.mrb[0].mxu0
        %v2248 = vadd.f32 0.0, %v2247
        %v2249 = vpop.f32.mrb[0].mxu0
        %v2250 = vpop.f32.mrb[0].mxu0
        %v2251 = vadd.f32 0.0, %v2250
        %v2252 = vpop.f32.mrb[0].mxu0
        %2253 = vmatprep.mubr.bf16.mxu0 %v1495
        %2254 = vmatmul.mubr.bf16.gmra.mrb[0].mxu0 %v1479
        %v2255 = vpop.f32.mrb[0].mxu0
        %v2256 = vadd.f32 0.0, %v2255
        %v2257 = vpop.f32.mrb[0].mxu0
        %v2258 = vpop.f32.mrb[0].mxu0
        %v2259 = vadd.f32 0.0, %v2258
        %v2260 = vpop.f32.mrb[0].mxu0
        %2261 = vmatprep.mubr.bf16.mxu0 %v1496
        %2262 = vmatmul.mubr.bf16.gmra.mrb[0].mxu0 %v1480
        %v2263 = vpop.f32.mrb[0].mxu0
        %v2264 = vadd.f32 0.0, %v2263
        %v2265 = vpop.f32.mrb[0].mxu0
        %v2266 = vpop.f32.mrb[0].mxu0
        %v2267 = vadd.f32 0.0, %v2266
        %v2268 = vpop.f32.mrb[0].mxu0
        %2269 = vdwg.mxu0
        %2270 = vmatprep.subr.bf16.mxu0 0
        %2271 = vmatpush1.bf16.msra.mxu0 %v2077
        %2272 = vmatprep.subr.bf16.mxu0 0
        %2273 = vmatpush1.bf16.msra.mxu0 %v2078
        %2274 = vmatprep.subr.bf16.mxu0 0
        %2275 = vmatpush1.bf16.msra.mxu0 %v2079
        %2276 = vmatprep.subr.bf16.mxu0 0
        %2277 = vmatpush1.bf16.msra.mxu0 %v2080
        %2278 = vmatprep.subr.bf16.mxu0 0
        %2279 = vmatpush1.bf16.msra.mxu0 %v2081
        %2280 = vmatprep.subr.bf16.mxu0 0
        %2281 = vmatpush1.bf16.msra.mxu0 %v2082
        %2282 = vmatprep.subr.bf16.mxu0 0
        %2283 = vmatpush1.bf16.msra.mxu0 %v2083
        %2284 = vmatprep.subr.bf16.mxu0 0
        %2285 = vmatpush1.bf16.msra.mxu0 %v2084
        %2286 = vmatprep.subr.bf16.mxu0 0
        %2287 = vmatpush1.bf16.msra.mxu0 %v2085
        %2288 = vmatprep.subr.bf16.mxu0 0
        %2289 = vmatpush1.bf16.msra.mxu0 %v2086
        %2290 = vmatprep.subr.bf16.mxu0 0
        %2291 = vmatpush1.bf16.msra.mxu0 %v2087
        %2292 = vmatprep.subr.bf16.mxu0 0
        %2293 = vmatpush1.bf16.msra.mxu0 %v2088
        %2294 = vmatprep.subr.bf16.mxu0 0
        %2295 = vmatpush1.bf16.msra.mxu0 %v2089
        %2296 = vmatprep.subr.bf16.mxu0 0
        %2297 = vmatpush1.bf16.msra.mxu0 %v2090
        %2298 = vmatprep.subr.bf16.mxu0 0
        %2299 = vmatpush1.bf16.msra.mxu0 %v2091
        %2300 = vmatprep.subr.bf16.mxu0 0
        %2301 = vmatpush1.bf16.msra.mxu0 %v2092
        %2302 = vmatprep.mubr.bf16.mxu0 %v1533
        %2303 = vmatmul.mubr.bf16.gmra.mrb[0].mxu0 %v1509
        %v2304 = vpop.f32.mrb[0].mxu0
        %v2305 = vadd.f32 %v2240, %v2304
        %v2306 = vpop.f32.mrb[0].mxu0
        %v2307 = vpop.f32.mrb[0].mxu0
        %v2308 = vadd.f32 %v2243, %v2307
        %v2309 = vpop.f32.mrb[0].mxu0
        %2310 = vmatprep.mubr.bf16.mxu0 %v1534
        %2311 = vmatmul.mubr.bf16.gmra.mrb[0].mxu0 %v1510
        %v2312 = vpop.f32.mrb[0].mxu0
        %v2313 = vadd.f32 %v2248, %v2312
        %v2314 = vpop.f32.mrb[0].mxu0
        %v2315 = vpop.f32.mrb[0].mxu0
        %v2316 = vadd.f32 %v2251, %v2315
        %v2317 = vpop.f32.mrb[0].mxu0
        %2318 = vmatprep.mubr.bf16.mxu0 %v1535
        %2319 = vmatmul.mubr.bf16.gmra.mrb[0].mxu0 %v1511
        %v2320 = vpop.f32.mrb[0].mxu0
        %v2321 = vadd.f32 %v2256, %v2320
        %v2322 = vpop.f32.mrb[0].mxu0
        %v2323 = vpop.f32.mrb[0].mxu0
        %v2324 = vadd.f32 %v2259, %v2323
        %v2325 = vpop.f32.mrb[0].mxu0
        %2326 = vmatprep.mubr.bf16.mxu0 %v1536
        %2327 = vmatmul.mubr.bf16.gmra.mrb[0].mxu0 %v1512
        %v2328 = vpop.f32.mrb[0].mxu0
        %v2329 = vadd.f32 %v2264, %v2328
        %v2330 = vpop.f32.mrb[0].mxu0
        %v2331 = vpop.f32.mrb[0].mxu0
        %v2332 = vadd.f32 %v2267, %v2331
        %v2333 = vpop.f32.mrb[0].mxu0
        %2334 = vdwg.mxu0
        %2335 = vmatprep.subr.bf16.mxu0 0
        %2336 = vmatpush1.bf16.msra.mxu0 %v2093
        %2337 = vmatprep.subr.bf16.mxu0 0
        %2338 = vmatpush1.bf16.msra.mxu0 %v2094
        %2339 = vmatprep.subr.bf16.mxu0 0
        %2340 = vmatpush1.bf16.msra.mxu0 %v2095
        %2341 = vmatprep.subr.bf16.mxu0 0
        %2342 = vmatpush1.bf16.msra.mxu0 %v2096
        %2343 = vmatprep.subr.bf16.mxu0 0
        %2344 = vmatpush1.bf16.msra.mxu0 %v2097
        %2345 = vmatprep.subr.bf16.mxu0 0
        %2346 = vmatpush1.bf16.msra.mxu0 %v2098
        %2347 = vmatprep.subr.bf16.mxu0 0
        %2348 = vmatpush1.bf16.msra.mxu0 %v2099
        %2349 = vmatprep.subr.bf16.mxu0 0
        %2350 = vmatpush1.bf16.msra.mxu0 %v2100
        %2351 = vmatprep.subr.bf16.mxu0 0
        %2352 = vmatpush1.bf16.msra.mxu0 %v2101
        %2353 = vmatprep.subr.bf16.mxu0 0
        %2354 = vmatpush1.bf16.msra.mxu0 %v2102
        %2355 = vmatprep.subr.bf16.mxu0 0
        %2356 = vmatpush1.bf16.msra.mxu0 %v2103
        %2357 = vmatprep.subr.bf16.mxu0 0
        %2358 = vmatpush1.bf16.msra.mxu0 %v2104
        %2359 = vmatprep.subr.bf16.mxu0 0
        %2360 = vmatpush1.bf16.msra.mxu0 %v2105
        %2361 = vmatprep.subr.bf16.mxu0 0
        %2362 = vmatpush1.bf16.msra.mxu0 %v2106
        %2363 = vmatprep.subr.bf16.mxu0 0
        %2364 = vmatpush1.bf16.msra.mxu0 %v2107
        %2365 = vmatprep.subr.bf16.mxu0 0
        %2366 = vmatpush1.bf16.msra.mxu0 %v2108
        %2367 = vmatprep.mubr.bf16.mxu0 %v1565
        %2368 = vmatmul.mubr.bf16.gmra.mrb[0].mxu0 %v1549
        %v2369 = vpop.f32.mrb[0].mxu0
        %v2370 = vadd.f32 %v2305, %v2369
        %v2371 = vpop.f32.mrb[0].mxu0
        %v2372 = vpop.f32.mrb[0].mxu0
        %v2373 = vadd.f32 %v2308, %v2372
        %v2374 = vpop.f32.mrb[0].mxu0
        %2375 = vmatprep.mubr.bf16.mxu0 %v1566
        %2376 = vmatmul.mubr.bf16.gmra.mrb[0].mxu0 %v1550
        %v2377 = vpop.f32.mrb[0].mxu0
        %v2378 = vadd.f32 %v2313, %v2377
        %v2379 = vpop.f32.mrb[0].mxu0
        %v2380 = vpop.f32.mrb[0].mxu0
        %v2381 = vadd.f32 %v2316, %v2380
        %v2382 = vpop.f32.mrb[0].mxu0
        %2383 = vmatprep.mubr.bf16.mxu0 %v1567
        %2384 = vmatmul.mubr.bf16.gmra.mrb[0].mxu0 %v1551
        %v2385 = vpop.f32.mrb[0].mxu0
        %v2386 = vadd.f32 %v2321, %v2385
        %v2387 = vpop.f32.mrb[0].mxu0
        %v2388 = vpop.f32.mrb[0].mxu0
        %v2389 = vadd.f32 %v2324, %v2388
        %v2390 = vpop.f32.mrb[0].mxu0
        %2391 = vmatprep.mubr.bf16.mxu0 %v1568
        %2392 = vmatmul.mubr.bf16.gmra.mrb[0].mxu0 %v1552
        %v2393 = vpop.f32.mrb[0].mxu0
        %v2394 = vadd.f32 %v2329, %v2393
        %v2395 = vpop.f32.mrb[0].mxu0
        %v2396 = vpop.f32.mrb[0].mxu0
        %v2397 = vadd.f32 %v2332, %v2396
        %v2398 = vpop.f32.mrb[0].mxu0
        %2399 = vdwg.mxu0
        %2400 = vmatprep.subr.bf16.mxu0 0
        %2401 = vmatpush1.bf16.msra.mxu0 %v2109
        %2402 = vmatprep.subr.bf16.mxu0 0
        %2403 = vmatpush1.bf16.msra.mxu0 %v2110
        %2404 = vmatprep.subr.bf16.mxu0 0
        %2405 = vmatpush1.bf16.msra.mxu0 %v2111
        %2406 = vmatprep.subr.bf16.mxu0 0
        %2407 = vmatpush1.bf16.msra.mxu0 %v2112
        %2408 = vmatprep.subr.bf16.mxu0 0
        %2409 = vmatpush1.bf16.msra.mxu0 %v2113
        %2410 = vmatprep.subr.bf16.mxu0 0
        %2411 = vmatpush1.bf16.msra.mxu0 %v2114
        %2412 = vmatprep.subr.bf16.mxu0 0
        %2413 = vmatpush1.bf16.msra.mxu0 %v2115
        %2414 = vmatprep.subr.bf16.mxu0 0
        %2415 = vmatpush1.bf16.msra.mxu0 %v2116
        %2416 = vmatprep.subr.bf16.mxu0 0
        %2417 = vmatpush1.bf16.msra.mxu0 %v2117
        %2418 = vmatprep.subr.bf16.mxu0 0
        %2419 = vmatpush1.bf16.msra.mxu0 %v2118
        %2420 = vmatprep.subr.bf16.mxu0 0
        %2421 = vmatpush1.bf16.msra.mxu0 %v2119
        %2422 = vmatprep.subr.bf16.mxu0 0
        %2423 = vmatpush1.bf16.msra.mxu0 %v2120
        %2424 = vmatprep.subr.bf16.mxu0 0
        %2425 = vmatpush1.bf16.msra.mxu0 %v2121
        %2426 = vmatprep.subr.bf16.mxu0 0
        %2427 = vmatpush1.bf16.msra.mxu0 %v2122
        %2428 = vmatprep.subr.bf16.mxu0 0
        %2429 = vmatpush1.bf16.msra.mxu0 %v2123
        %2430 = vmatprep.subr.bf16.mxu0 0
        %2431 = vmatpush1.bf16.msra.mxu0 %v2124
        %2432 = vmatprep.mubr.bf16.mxu0 %v1605
        %2433 = vmatmul.mubr.bf16.gmra.mrb[0].mxu0 %v1589
        %v2434 = vpop.f32.mrb[0].mxu0
        %v2435 = vadd.f32 %v2370, %v2434
        %v2436 = vpop.f32.mrb[0].mxu0
        %v2437 = vpop.f32.mrb[0].mxu0
        %v2438 = vadd.f32 %v2373, %v2437
        %v2439 = vpop.f32.mrb[0].mxu0
        %2440 = vmatprep.mubr.bf16.mxu0 %v1606
        %2441 = vmatmul.mubr.bf16.gmra.mrb[0].mxu0 %v1590
        %v2442 = vpop.f32.mrb[0].mxu0
        %v2443 = vadd.f32 %v2378, %v2442
        %v2444 = vpop.f32.mrb[0].mxu0
        %v2445 = vpop.f32.mrb[0].mxu0
        %v2446 = vadd.f32 %v2381, %v2445
        %v2447 = vpop.f32.mrb[0].mxu0
        %2448 = vmatprep.mubr.bf16.mxu0 %v1607
        %2449 = vmatmul.mubr.bf16.gmra.mrb[0].mxu0 %v1591
        %v2450 = vpop.f32.mrb[0].mxu0
        %v2451 = vadd.f32 %v2386, %v2450
        %v2452 = vpop.f32.mrb[0].mxu0
        %v2453 = vpop.f32.mrb[0].mxu0
        %v2454 = vadd.f32 %v2389, %v2453
        %v2455 = vpop.f32.mrb[0].mxu0
        %2456 = vmatprep.mubr.bf16.mxu0 %v1608
        %2457 = vmatmul.mubr.bf16.gmra.mrb[0].mxu0 %v1592
        %v2458 = vpop.f32.mrb[0].mxu0
        %v2459 = vadd.f32 %v2394, %v2458
        %v2460 = vpop.f32.mrb[0].mxu0
        %v2461 = vpop.f32.mrb[0].mxu0
        %v2462 = vadd.f32 %v2397, %v2461
        %v2463 = vpop.f32.mrb[0].mxu0
        %2464 = vdwg.mxu0
        %2465 = vmatprep.subr.bf16.mxu0 0
        %2466 = vmatpush1.bf16.msra.mxu0 %v2125
        %2467 = vmatprep.subr.bf16.mxu0 0
        %2468 = vmatpush1.bf16.msra.mxu0 %v2126
        %2469 = vmatprep.subr.bf16.mxu0 0
        %2470 = vmatpush1.bf16.msra.mxu0 %v2127
        %2471 = vmatprep.subr.bf16.mxu0 0
        %2472 = vmatpush1.bf16.msra.mxu0 %v2128
        %2473 = vmatprep.subr.bf16.mxu0 0
        %2474 = vmatpush1.bf16.msra.mxu0 %v2129
        %2475 = vmatprep.subr.bf16.mxu0 0
        %2476 = vmatpush1.bf16.msra.mxu0 %v2130
        %2477 = vmatprep.subr.bf16.mxu0 0
        %2478 = vmatpush1.bf16.msra.mxu0 %v2131
        %2479 = vmatprep.subr.bf16.mxu0 0
        %2480 = vmatpush1.bf16.msra.mxu0 %v2132
        %2481 = vmatprep.subr.bf16.mxu0 0
        %2482 = vmatpush1.bf16.msra.mxu0 0
        %2483 = vmatprep.subr.bf16.mxu0 0
        %2484 = vmatpush1.bf16.msra.mxu0 0
        %2485 = vmatprep.subr.bf16.mxu0 0
        %2486 = vmatpush1.bf16.msra.mxu0 0
        %2487 = vmatprep.subr.bf16.mxu0 0
        %2488 = vmatpush1.bf16.msra.mxu0 0
        %2489 = vmatprep.subr.bf16.mxu0 0
        %2490 = vmatpush1.bf16.msra.mxu0 0
        %2491 = vmatprep.subr.bf16.mxu0 0
        %2492 = vmatpush1.bf16.msra.mxu0 0
        %2493 = vmatprep.subr.bf16.mxu0 0
        %2494 = vmatpush1.bf16.msra.mxu0 0
        %2495 = vmatprep.subr.bf16.mxu0 0
        %2496 = vmatpush1.bf16.msra.mxu0 0
        %2497 = vmatprep.mubr.bf16.mxu0 0
        %2498 = vmatmul.mubr.bf16.gmra.mrb[0].mxu0 %v1621
        %v2499 = vpop.f32.mrb[0].mxu0
        %v2500 = vadd.f32 %v2435, %v2499
        %v2501 = vpop.f32.mrb[0].mxu0
        %v2502 = vpop.f32.mrb[0].mxu0
        %v2503 = vadd.f32 %v2438, %v2502
        %v2504 = vpop.f32.mrb[0].mxu0
        %2505 = vmatprep.mubr.bf16.mxu0 0
        %2506 = vmatmul.mubr.bf16.gmra.mrb[0].mxu0 %v1622
        %v2507 = vpop.f32.mrb[0].mxu0
        %v2508 = vadd.f32 %v2443, %v2507
        %v2509 = vpop.f32.mrb[0].mxu0
        %v2510 = vpop.f32.mrb[0].mxu0
        %v2511 = vadd.f32 %v2446, %v2510
        %v2512 = vpop.f32.mrb[0].mxu0
        %2513 = vmatprep.mubr.bf16.mxu0 0
        %2514 = vmatmul.mubr.bf16.gmra.mrb[0].mxu0 %v1623
        %v2515 = vpop.f32.mrb[0].mxu0
        %v2516 = vadd.f32 %v2451, %v2515
        %v2517 = vpop.f32.mrb[0].mxu0
        %v2518 = vpop.f32.mrb[0].mxu0
        %v2519 = vadd.f32 %v2454, %v2518
        %v2520 = vpop.f32.mrb[0].mxu0
        %2521 = vmatprep.mubr.bf16.mxu0 0
        %2522 = vmatmul.mubr.bf16.gmra.mrb[0].mxu0 %v1624
        %v2523 = vpop.f32.mrb[0].mxu0
        %v2524 = vadd.f32 %v2459, %v2523
        %v2525 = vpop.f32.mrb[0].mxu0
        %v2526 = vpop.f32.mrb[0].mxu0
        %v2527 = vadd.f32 %v2462, %v2526
        %v2528 = vpop.f32.mrb[0].mxu0
        %2529 = vdwg.mxu0
        %v2530 = vld [vmem:[#allocation12] sm:$0x1]
        %v2532 = vlaneseq
        %v2533 = vshrl.u32 %v2532, 7
        %v2534 = vsub.s32 0, %v2533
        %v2535 = vrot.slane %v2530, %v2534
        %v2537 = vmul.f32 %v2500, %v2535
        %v2538 = vmul.f32 %v2503, %v2535
        %v2539 = vmul.f32 %v2508, %v2535
        %v2540 = vmul.f32 %v2511, %v2535
        %v2541 = vmul.f32 %v2516, %v2535
        %v2542 = vmul.f32 %v2519, %v2535
        %v2543 = vmul.f32 %v2524, %v2535
        %v2544 = vmul.f32 %v2527, %v2535
        %v2545 = vld [vmem:[#allocation14] sm:$0x1]
        %v2547 = vlaneseq
        %v2548 = vshrl.u32 %v2547, 7
        %v2549 = vsub.s32 0, %v2548
        %v2550 = vrot.slane %v2545, %v2549
        %v2552 = vadd.f32 %v2537, %v2550
        %v2553 = vadd.f32 %v2538, %v2550
        %v2554 = vadd.f32 %v2539, %v2550
        %v2555 = vadd.f32 %v2540, %v2550
        %v2556 = vadd.f32 %v2541, %v2550
        %v2557 = vadd.f32 %v2542, %v2550
        %v2558 = vadd.f32 %v2543, %v2550
        %v2559 = vadd.f32 %v2544, %v2550
        %v2560 = vmax.f32 %v2552, 0.0
        %v2561 = vmax.f32 %v2553, 0.0
        %v2562 = vmax.f32 %v2554, 0.0
        %v2563 = vmax.f32 %v2555, 0.0
        %v2564 = vmax.f32 %v2556, 0.0
        %v2565 = vmax.f32 %v2557, 0.0
        %v2566 = vmax.f32 %v2558, 0.0
        %v2567 = vmax.f32 %v2559, 0.0
        %v2568 = vpack.c.bf16 %v2561, %v2560
        %v2569 = vpack.c.bf16 %v2563, %v2562
        %v2570 = vpack.c.bf16 %v2565, %v2564
        %v2571 = vpack.c.bf16 %v2567, %v2566
        %v2572 = vld [vmem:[#allocation15] sm:$0xf]
        %v2573 = vld [vmem:[#allocation15 + $0x4] sm:$0xf]
        %v2574 = vld [vmem:[#allocation15 + $0x8] sm:$0xf]
        %v2575 = vld [vmem:[#allocation15 + $0xc] sm:$0xf]
        %v2576 = vld [vmem:[#allocation15 + $0x10] sm:$0xf]
        %v2577 = vld [vmem:[#allocation15 + $0x14] sm:$0xf]
        %v2578 = vld [vmem:[#allocation15 + $0x18] sm:$0xf]
        %v2579 = vld [vmem:[#allocation15 + $0x1c] sm:$0xf]
        %v2580 = vld [vmem:[#allocation15 + $0x20] sm:$0xf]
        %v2581 = vld [vmem:[#allocation15 + $0x24] sm:$0xf]
        %v2582 = vld [vmem:[#allocation15 + $0x28] sm:$0xf]
        %v2583 = vld [vmem:[#allocation15 + $0x2c] sm:$0xf]
        %v2584 = vld [vmem:[#allocation15 + $0x30] sm:$0xf]
        %v2585 = vld [vmem:[#allocation15 + $0x34] sm:$0xf]
        %v2586 = vld [vmem:[#allocation15 + $0x38] sm:$0xf]
        %v2587 = vld [vmem:[#allocation15 + $0x3c] sm:$0xf]
        %v2604 = vunpack.c.l.b16 %v2572
        %v2605 = vunpack.c.l.b16 %v2573
        %v2606 = vunpack.c.l.b16 %v2574
        %v2607 = vunpack.c.l.b16 %v2575
        %v2608 = vunpack.c.l.b16 %v2576
        %v2609 = vunpack.c.l.b16 %v2577
        %v2610 = vunpack.c.l.b16 %v2578
        %v2611 = vunpack.c.l.b16 %v2579
        %v2612 = vunpack.c.l.b16 %v2580
        %v2613 = vunpack.c.l.b16 %v2581
        %v2614 = vunpack.c.l.b16 %v2582
        %v2615 = vunpack.c.l.b16 %v2583
        %v2616 = vunpack.c.l.b16 %v2584
        %v2617 = vunpack.c.l.b16 %v2585
        %v2618 = vunpack.c.l.b16 %v2586
        %v2619 = vunpack.c.l.b16 %v2587
        %v2620 = vpack.c.b16 %v2605, %v2604
        %v2621 = vpack.c.b16 %v2607, %v2606
        %v2622 = vpack.c.b16 %v2609, %v2608
        %v2623 = vpack.c.b16 %v2611, %v2610
        %v2624 = vpack.c.b16 %v2613, %v2612
        %v2625 = vpack.c.b16 %v2615, %v2614
        %v2626 = vpack.c.b16 %v2617, %v2616
        %v2627 = vpack.c.b16 %v2619, %v2618
        %2636 = vmatprep.subr.bf16.mxu0 0
        %2637 = vmatpush1.bf16.msra.mxu0 %v2620
        %2638 = vmatprep.subr.bf16.mxu0 0
        %2639 = vmatpush1.bf16.msra.mxu0 %v2621
        %2640 = vmatprep.subr.bf16.mxu0 0
        %2641 = vmatpush1.bf16.msra.mxu0 %v2622
        %2642 = vmatprep.subr.bf16.mxu0 0
        %2643 = vmatpush1.bf16.msra.mxu0 %v2623
        %2644 = vmatprep.subr.bf16.mxu0 0
        %2645 = vmatpush1.bf16.msra.mxu0 %v2624
        %2646 = vmatprep.subr.bf16.mxu0 0
        %2647 = vmatpush1.bf16.msra.mxu0 %v2625
        %2648 = vmatprep.subr.bf16.mxu0 0
        %2649 = vmatpush1.bf16.msra.mxu0 %v2626
        %2650 = vmatprep.subr.bf16.mxu0 0
        %2651 = vmatpush1.bf16.msra.mxu0 %v2627
        %2652 = vmatprep.subr.bf16.mxu0 0
        %2653 = vmatpush1.bf16.msra.mxu0 0
        %2654 = vmatprep.subr.bf16.mxu0 0
        %2655 = vmatpush1.bf16.msra.mxu0 0
        %2656 = vmatprep.subr.bf16.mxu0 0
        %2657 = vmatpush1.bf16.msra.mxu0 0
        %2658 = vmatprep.subr.bf16.mxu0 0
        %2659 = vmatpush1.bf16.msra.mxu0 0
        %2660 = vmatprep.subr.bf16.mxu0 0
        %2661 = vmatpush1.bf16.msra.mxu0 0
        %2662 = vmatprep.subr.bf16.mxu0 0
        %2663 = vmatpush1.bf16.msra.mxu0 0
        %2664 = vmatprep.subr.bf16.mxu0 0
        %2665 = vmatpush1.bf16.msra.mxu0 0
        %2666 = vmatprep.subr.bf16.mxu0 0
        %2667 = vmatpush1.bf16.msra.mxu0 0
        %2668 = vmatprep.mubr.bf16.mxu0 0
        %2669 = vmatmul.mubr.bf16.gmra.mrb[0].mxu0 %v2568
        %v2670 = vpop.f32.mrb[0].mxu0
        %v2671 = vadd.f32 0.0, %v2670
        %v2672 = vpop.f32.mrb[0].mxu0
        %v2673 = vpop.f32.mrb[0].mxu0
        %v2674 = vadd.f32 0.0, %v2673
        %v2675 = vpop.f32.mrb[0].mxu0
        %2676 = vmatprep.mubr.bf16.mxu0 0
        %2677 = vmatmul.mubr.bf16.gmra.mrb[0].mxu0 %v2569
        %v2678 = vpop.f32.mrb[0].mxu0
        %v2679 = vadd.f32 0.0, %v2678
        %v2680 = vpop.f32.mrb[0].mxu0
        %v2681 = vpop.f32.mrb[0].mxu0
        %v2682 = vadd.f32 0.0, %v2681
        %v2683 = vpop.f32.mrb[0].mxu0
        %2684 = vmatprep.mubr.bf16.mxu0 0
        %2685 = vmatmul.mubr.bf16.gmra.mrb[0].mxu0 %v2570
        %v2686 = vpop.f32.mrb[0].mxu0
        %v2687 = vadd.f32 0.0, %v2686
        %v2688 = vpop.f32.mrb[0].mxu0
        %v2689 = vpop.f32.mrb[0].mxu0
        %v2690 = vadd.f32 0.0, %v2689
        %v2691 = vpop.f32.mrb[0].mxu0
        %2692 = vmatprep.mubr.bf16.mxu0 0
        %2693 = vmatmul.mubr.bf16.gmra.mrb[0].mxu0 %v2571
        %v2694 = vpop.f32.mrb[0].mxu0
        %v2695 = vadd.f32 0.0, %v2694
        %v2696 = vpop.f32.mrb[0].mxu0
        %v2697 = vpop.f32.mrb[0].mxu0
        %v2698 = vadd.f32 0.0, %v2697
        %v2699 = vpop.f32.mrb[0].mxu0
        %2700 = vdwg.mxu0
        %v2701 = vld [vmem:[#allocation17] sm:$0x1]
        %v2703 = vlaneseq
        %v2704 = vshrl.u32 %v2703, 7
        %v2705 = vsub.s32 0, %v2704
        %v2706 = vrot.slane %v2701, %v2705
        %v2708 = vmul.f32 %v2671, %v2706
        %v2709 = vmul.f32 %v2674, %v2706
        %v2710 = vmul.f32 %v2679, %v2706
        %v2711 = vmul.f32 %v2682, %v2706
        %v2712 = vmul.f32 %v2687, %v2706
        %v2713 = vmul.f32 %v2690, %v2706
        %v2714 = vmul.f32 %v2695, %v2706
        %v2715 = vmul.f32 %v2698, %v2706
        %v2716 = vld [vmem:[#allocation18] sm:$0x1]
        %v2718 = vlaneseq
        %v2719 = vshrl.u32 %v2718, 7
        %v2720 = vsub.s32 0, %v2719
        %v2721 = vrot.slane %v2716, %v2720
        %v2723 = vadd.f32 %v2708, %v2721
        %v2724 = vadd.f32 %v2709, %v2721
        %v2725 = vadd.f32 %v2710, %v2721
        %v2726 = vadd.f32 %v2711, %v2721
        %v2727 = vadd.f32 %v2712, %v2721
        %v2728 = vadd.f32 %v2713, %v2721
        %v2729 = vadd.f32 %v2714, %v2721
        %v2730 = vadd.f32 %v2715, %v2721
        %v2731 = vld [vmem:[%s424] sm:$0xff]
        %v2732 = vld [vmem:[%s424 + $0x8] sm:$0xff]
        %v2733 = vld [vmem:[%s424 + $0x10] sm:$0xff]
        %v2734 = vld [vmem:[%s424 + $0x18] sm:$0xff]
        %v2735 = vld [vmem:[%s424 + $0x20] sm:$0xff]
        %v2736 = vld [vmem:[%s424 + $0x28] sm:$0xff]
        %v2737 = vld [vmem:[%s424 + $0x30] sm:$0xff]
        %v2738 = vld [vmem:[%s424 + $0x38] sm:$0xff]
        %v2739 = vadd.f32 %v2723, %v2731
        %v2740 = vadd.f32 %v2724, %v2732
        %v2741 = vadd.f32 %v2725, %v2733
        %v2742 = vadd.f32 %v2726, %v2734
        %v2743 = vadd.f32 %v2727, %v2735
        %v2744 = vadd.f32 %v2728, %v2736
        %v2745 = vadd.f32 %v2729, %v2737
        %v2746 = vadd.f32 %v2730, %v2738
        %v2747 = vmax.f32 %v2739, 0.0
        %v2748 = vmax.f32 %v2740, 0.0
        %v2749 = vmax.f32 %v2741, 0.0
        %v2750 = vmax.f32 %v2742, 0.0
        %v2751 = vmax.f32 %v2743, 0.0
        %v2752 = vmax.f32 %v2744, 0.0
        %v2753 = vmax.f32 %v2745, 0.0
        %v2754 = vmax.f32 %v2746, 0.0
        %2755 = vst [vmem:[%s496] sm:$0xff] %v2747
        %2756 = vst [vmem:[%s496 + $0x8] sm:$0xff] %v2748
        %2757 = vst [vmem:[%s496 + $0x10] sm:$0xff] %v2749
        %2758 = vst [vmem:[%s496 + $0x18] sm:$0xff] %v2750
        %2759 = vst [vmem:[%s496 + $0x20] sm:$0xff] %v2751
        %2760 = vst [vmem:[%s496 + $0x28] sm:$0xff] %v2752
        %2761 = vst [vmem:[%s496 + $0x30] sm:$0xff] %v2753
        %2762 = vst [vmem:[%s496 + $0x38] sm:$0xff] %v2754
        %s2763 = sand.u32 %s255, 1
        %s2764 = scalar_lea.sflag [#allocation5], %s2763
        %s2765 = sand.u32 %s255, 1
        %s2766 = smul.addr %s2765, 64
        %s2767 = scalar_lea.vmem [#allocation20], %s2766
        // Predicated region
        $region101: #{tpu_custom_call.1} parent=59 // pred_check
          %p2768 = pneg %p265
        $region102: #{tpu_custom_call.1} parent=59 // pred_check_branch
          %2770 = sbr.rel (%p2768) target = $region104
        $region103: #{tpu_custom_call.1} parent=59 // pred_region
          %s2772 = ssub.s32 1024, 1024
          %2773 = vsyncadd %s2764, %s2772
          %s2774 = smul.addr %s32, 8
          %s2775 = smul.addr %s2774, 128
          %s2776 = scalar_lea.hbm %s10, %s2775
          %s2777 = sshll.u32 %s2767, 4
          %s2778 = int_to_ptr.vmem [resolvable:$true] %s2777
          %2783 = dma.vmem_to_hbm [thread:$0]  %s2778, 1024, %s2776, %s2764, 128, 128, 8
        $region104: #{tpu_custom_call.1} parent=59 // pred_fallthru
          _
      $region60: #{tpu_custom_call.1} parent=5 // pred_fallthru
        _
      %p2784 = scmp.le.s32.totalorder 2, %s27
      // Predicated region
      $region105: #{tpu_custom_call.1} parent=5 // pred_check
        %p2785 = pneg %p2784
      $region106: #{tpu_custom_call.1} parent=5 // pred_check_branch
        %2787 = sbr.rel (%p2785) target = $region108
      $region107: #{tpu_custom_call.1} parent=5 // pred_region
        %s2788 = ssub.s32 %s27, 2
        // Predicated region
        $region109: #{tpu_custom_call.1} parent=107 // pred_check
          %p2789 = pneg %p271
        $region110: #{tpu_custom_call.1} parent=107 // pred_check_branch
          %2791 = sbr.rel (%p2789) target = $region112
        $region111: #{tpu_custom_call.1} parent=107 // pred_region
          %s2792 = sand.u32 %s256, 1
          %s2793 = scalar_lea.sflag [#allocation5], %s2792
          %s2794 = sand.u32 %s256, 1
          %s2795 = smul.addr %s2794, 64
          %s2796 = scalar_lea.vmem [#allocation20], %s2795
          %2797 = dma.done %s2793, 1024
        $region112: #{tpu_custom_call.1} parent=107 // pred_fallthru
          _
      $region108: #{tpu_custom_call.1} parent=5 // pred_fallthru
        _
    $region6: #{tpu_custom_call.1} parent=1 // loop_footer
      %s31 = sadd.s32 1, %s27
    $region7: #{tpu_custom_call.1} parent=1 // loop_footer_branch
      %26 = sbr.rel target = $region3
    $region8: #{tpu_custom_call.1} parent=1 // loop_exit
      _
    %2798 = vsyncpa [#allocation4], 1
    %s2799 = scalar_lea.sflag [#allocation4], 1
    %2800 = vsyncpa %s2799, 1
    %2801 = vsyncpa [#allocation7], 1
    %2802 = vsyncpa [#allocation10], 1
    %2803 = vsyncpa [#allocation13], 1
    %2804 = vsyncpa [#allocation16], 1
    %2805 = vsyncpa [#allocation19], 1
    %2806 = vsyncpa [#allocation5], 1
    %s2807 = scalar_lea.sflag [#allocation5], 1
    %2808 = vsyncpa %s2807, 1

</llo_original>
